<compile_context>
chip_gen: v7x
topology: tpu7x:2x2x1
jax: 0.10.0
libtpu: 0.0.40
codegen_flags: <defaults>
</compile_context>

<pallas_src>
import jax
import jax.numpy as jnp
from jax.experimental import pallas as pl
from jax.experimental.pallas import tpu as pltpu

_LANES = 128
_SUBLANES = 8


def _round_up(x, m):
    return (x + m - 1) // m * m


def _pick_group_size(batch, nv, ne):
    """Graphs per grid step.

    Target ~256 packed node/edge rows per step (v6e/v7x MXU width), keep at
    least two grid steps when possible (v7x dual TensorCore on the parallel
    batch axis), and keep the flattened row blocks 8-sublane aligned.
    """
    if batch <= 1:
        return 1
    cap = max(1, 256 // max(nv, ne, 1))
    multi, single = [], []
    for g in range(1, batch + 1):
        if batch % g:
            continue
        if batch // g >= 2:
            if g <= cap and (g * nv) % _SUBLANES == 0 and (g * ne) % _SUBLANES == 0:
                multi.append(g)
        else:
            single.append(g)  # one full-batch block is always layout-legal
    return max(multi) if multi else max(single)


# ------------------------------ fused kernel -------------------------------- #

def _gcn_grouped_kernel(x2d_ref, z2d_ref, adje_ref, adjv_ref, t_ref, tt_ref,
                        w1_ref, w2_ref, w3_ref, consts_ref,
                        out_ref, x2_scr):
    G, nv, _ = adjv_ref.shape
    ne = adje_ref.shape[1]
    fe = z2d_ref.shape[1]
    nh = w1_ref.shape[1]

    # Resident constants slab (fetched once: constant index map).
    consts = consts_ref[...]
    p1 = consts[0:1, :fe]                                   # (1, Fe)
    b1 = consts[1:2, :nh]                                   # (1, nhid)
    p2 = consts[2:3, :nh]                                   # (1, nhid)
    b2 = consts[3:4, :fe]                                   # (1, Fe)
    p3 = consts[4:5, :fe]                                   # (1, Fe)
    b3 = consts[5:6, :]                                     # (1, Cpad)
    o_e = _SUBLANES
    o_v = o_e + _round_up(ne, _SUBLANES)
    eye_e = consts[o_e:o_e + ne, :ne] > 0.5                 # (Ne, Ne)
    eye_v = consts[o_v:o_v + nv, :nv] > 0.5                 # (Nv, Nv)

    one = jnp.float32(1.0)

    # ------- gc1 (node layer, Fv -> nhid): shared X @ W1 for all G graphs ----
    xw1 = jnp.dot(x2d_ref[...], w1_ref[...],
                  preferred_element_type=jnp.float32)        # (G*Nv, nhid)
    for g in range(G):
        zg = z2d_ref[pl.ds(g * ne, ne), :]                   # (Ne, Fe)
        tg = t_ref[g]                                        # (Nv, Ne)
        ttg = tt_ref[g]                                      # (Ne, Nv)
        d1 = jnp.sum(zg * p1, axis=-1, keepdims=True)        # (Ne, 1)  VPU/XLU
        m1 = jnp.dot(tg, d1 * ttg,
                     preferred_element_type=jnp.float32)     # T diag(d) T^T
        a1 = jnp.where(eye_v, one, m1) * adjv_ref[g]         # set_diag(.,1)*adj_v
        x1 = jnp.dot(a1, xw1[g * nv:(g + 1) * nv, :],
                     preferred_element_type=jnp.float32) + b1
        x2_scr[pl.ds(g * nv, nv), :] = jnp.maximum(x1, 0.0)  # relu; dropout = id

    # ------- gc2 (edge layer, Fe -> Fe) + gc3 (node layer, nhid -> Cpad) -----
    z1w2 = jnp.dot(jnp.maximum(z2d_ref[...], 0.0), w2_ref[...],
                   preferred_element_type=jnp.float32)       # (G*Ne, Fe)
    x2all = x2_scr[...]                                      # (G*Nv, nhid)
    xw3 = jnp.dot(x2all, w3_ref[...],
                  preferred_element_type=jnp.float32)        # (G*Nv, Cpad)
    for g in range(G):
        tg = t_ref[g]
        ttg = tt_ref[g]
        x1 = x2all[g * nv:(g + 1) * nv, :]                   # (Nv, nhid) relu'd

        # gc2: edge layer
        d2 = jnp.sum(x1 * p2, axis=-1, keepdims=True)        # (Nv, 1)
        m2 = jnp.dot(ttg, d2 * tg,
                     preferred_element_type=jnp.float32)     # T^T diag(d) T
        a2 = jnp.where(eye_e, one, m2) * adje_ref[g]
        col_max = jnp.max(a2, axis=0, keepdims=True)         # (1, Ne)
        a2 = a2 / col_max                                    # exact f32 divide
        z2 = jnp.dot(a2, z1w2[g * ne:(g + 1) * ne, :],
                     preferred_element_type=jnp.float32) + b2
        z2 = jnp.maximum(z2, 0.0)                            # relu; dropout = id

        # gc3: node layer (no final relu)
        d3 = jnp.sum(z2 * p3, axis=-1, keepdims=True)        # (Ne, 1)
        m3 = jnp.dot(tg, d3 * ttg,
                     preferred_element_type=jnp.float32)
        a3 = jnp.where(eye_v, one, m3) * adjv_ref[g]
        out_ref[pl.ds(g * nv, nv), :] = jnp.dot(
            a3, xw3[g * nv:(g + 1) * nv, :],
            preferred_element_type=jnp.float32) + b3


# ------------------------------ pallas_call glue ----------------------------- #

def _cost_estimate(B, Nv, Ne, Fv, Fe, H, Cpad):
    per_graph = 2 * (Nv * Ne * Nv + Nv * Fv * H + Nv * Nv * H          # gc1
                     + Ne * Nv * Ne + Ne * Fe * Fe + Ne * Ne * Fe      # gc2
                     + Nv * Ne * Nv + Nv * H * Cpad + Nv * Nv * Cpad)  # gc3
    bytes_graphs = 4 * B * (Nv * Fv + Ne * Fe + Ne * Ne + Nv * Nv
                            + 2 * Nv * Ne + Nv * Cpad)
    bytes_params = 4 * (Fv * H + Fe * Fe + H * Cpad
                        + (_SUBLANES + _round_up(Ne, 8) + _round_up(Nv, 8)) * _LANES)
    return pl.CostEstimate(flops=int(B * per_graph), transcendentals=0,
                           bytes_accessed=int(bytes_graphs + bytes_params))


@jax.jit
def _gcn_batched(params, X, Z, adj_e, adj_v, T):
    B, Nv, Fv = X.shape
    _, Ne, Fe = Z.shape
    H = params["W1"].shape[1]
    C = params["W3"].shape[1]
    Cpad = _round_up(max(C, _LANES), _LANES)

    assert Fe <= _LANES and H <= _LANES and C <= _LANES, "feature dims must be <= 128"
    assert Nv <= _LANES and Ne <= _LANES, "per-graph node/edge counts must be <= 128"

    G = _pick_group_size(B, Nv, Ne)
    num_groups = B // G

    X2d = X.reshape(B * Nv, Fv)                    # flattened node rows
    Z2d = Z.reshape(B * Ne, Fe)                    # flattened edge rows
    Tt = jnp.swapaxes(T, 1, 2)                     # (B, Ne, Nv)

    W3p = jnp.pad(params["W3"], ((0, 0), (0, Cpad - C)))   # lane-dense output
    b3p = jnp.pad(params["b3"], ((0, 0), (0, Cpad - C)))

    # One resident constants slab: p/b vectors (rows 0..5) + eye_e + eye_v.
    rows_e = _round_up(Ne, _SUBLANES)
    rows_v = _round_up(Nv, _SUBLANES)
    consts = jnp.zeros((_SUBLANES + rows_e + rows_v, _LANES), jnp.float32)
    consts = consts.at[0, :Fe].set(params["p1"].reshape(-1))
    consts = consts.at[1, :H].set(params["b1"].reshape(-1))
    consts = consts.at[2, :H].set(params["p2"].reshape(-1))
    consts = consts.at[3, :Fe].set(params["b2"].reshape(-1))
    consts = consts.at[4, :Fe].set(params["p3"].reshape(-1))
    consts = consts.at[5, :Cpad].set(b3p.reshape(-1))
    consts = consts.at[_SUBLANES:_SUBLANES + Ne, :Ne].set(
        jnp.eye(Ne, dtype=jnp.float32))
    consts = consts.at[_SUBLANES + rows_e:_SUBLANES + rows_e + Nv, :Nv].set(
        jnp.eye(Nv, dtype=jnp.float32))

    def group_spec3(n, m):
        return pl.BlockSpec((G, n, m), lambda b: (b, 0, 0))

    def shared_spec(shape):
        return pl.BlockSpec(tuple(shape), lambda b: (0, 0))

    out2d = pl.pallas_call(
        _gcn_grouped_kernel,
        out_shape=jax.ShapeDtypeStruct((B * Nv, Cpad), jnp.float32),
        grid=(num_groups,),
        in_specs=[
            pl.BlockSpec((G * Nv, Fv), lambda b: (b, 0)),   # node rows (flat)
            pl.BlockSpec((G * Ne, Fe), lambda b: (b, 0)),   # edge rows (flat)
            group_spec3(Ne, Ne),                            # adj_e
            group_spec3(Nv, Nv),                            # adj_v
            group_spec3(Nv, Ne),                            # T
            group_spec3(Ne, Nv),                            # T^T
            shared_spec(params["W1"].shape),                # W1
            shared_spec(params["W2"].shape),                # W2
            shared_spec(W3p.shape),                         # W3 (padded)
            shared_spec(consts.shape),                      # packed consts slab
        ],
        out_specs=pl.BlockSpec((G * Nv, Cpad), lambda b: (b, 0)),
        scratch_shapes=[pltpu.VMEM((G * Nv, H), jnp.float32)],
        compiler_params=pltpu.CompilerParams(
            dimension_semantics=("parallel",),
            vmem_limit_bytes=32 * 1024 * 1024),
        cost_estimate=_cost_estimate(B, Nv, Ne, Fv, Fe, H, Cpad),
    )(X2d, Z2d, adj_e, adj_v, T, Tt,
      params["W1"], params["W2"], W3p, consts)

    return out2d.reshape(B, Nv, Cpad)[:, :, :C]


# --------------------------------- GCN model --------------------------------- #

def init_gcn_params(key, nfeat_v, nfeat_e, nhid, nclass):
    ks = jax.random.split(key, 9)

    def u(k, shape, scale=0.1):
        return (scale * jax.random.normal(k, shape)).astype(jnp.float32)

    return {
        # gc1: node layer (nfeat_v -> nhid), p over edge features
        "W1": u(ks[0], (nfeat_v, nhid)),
        "p1": u(ks[1], (1, nfeat_e), 1.0),
        "b1": u(ks[2], (1, nhid)),
        # gc2: edge layer (nfeat_e -> nfeat_e), p over node hidden features
        "W2": u(ks[3], (nfeat_e, nfeat_e)),
        "p2": u(ks[4], (1, nhid), 1.0),
        "b2": u(ks[5], (1, nfeat_e)),
        # gc3: node layer (nhid -> nclass), p over edge features
        "W3": u(ks[6], (nhid, nclass)),
        "p3": u(ks[7], (1, nfeat_e), 1.0),
        "b3": u(ks[8], (1, nclass)),
    }


def gcn_forward(params, X_list, Z_list, adj_e_list, adj_v_list, T_list):
    """Inference-mode forward pass. Returns stacked node outputs (batch, Nv, nclass)."""
    X = jnp.stack(X_list).astype(jnp.float32)
    Z = jnp.stack(Z_list).astype(jnp.float32)
    adj_e = jnp.stack(adj_e_list).astype(jnp.float32)
    adj_v = jnp.stack(adj_v_list).astype(jnp.float32)
    T = jnp.stack(T_list).astype(jnp.float32)
    return _gcn_batched(params, X, Z, adj_e, adj_v, T)


# ----------------------------- pure-JAX reference ----------------------------- #

def _gcn_reference(params, X, Z, adj_e, adj_v, T):
    """Pure-JAX/XLA reference of the same forward pass (verification only)."""
    hi = jax.lax.Precision.HIGHEST

    def mm(a, b):
        return jnp.dot(a, b, precision=hi)

    def node_layer(Hv, He, adj, Tm, W, p, b):
        d = jnp.sum(He * p, axis=-1)
        m = mm(Tm, d[:, None] * Tm.T)
        m = jnp.where(jnp.eye(m.shape[0], dtype=bool), 1.0, m)
        return mm(m * adj, mm(Hv, W)) + b

    def edge_layer(Hv, He, adj, Tm, W, p, b):
        d = jnp.sum(Hv * p, axis=-1)
        m = mm(Tm.T, d[:, None] * Tm)
        m = jnp.where(jnp.eye(m.shape[0], dtype=bool), 1.0, m)
        a = m * adj
        a = a / jnp.max(a, axis=0, keepdims=True)
        return mm(a, mm(He, W)) + b

    outs = []
    for i in range(X.shape[0]):
        x, z = X[i], Z[i]
        x1 = jax.nn.relu(node_layer(x, z, adj_v[i], T[i],
                                    params["W1"], params["p1"], params["b1"]))
        z1 = jax.nn.relu(z)
        z2 = jax.nn.relu(edge_layer(x1, z1, adj_e[i], T[i],
                                    params["W2"], params["p2"], params["b2"]))
        out = node_layer(x1, z2, adj_v[i], T[i],
                         params["W3"], params["p3"], params["b3"])
        outs.append(out)
    return jnp.stack(outs)


# ----------------------------------- main ------------------------------------ #

if __name__ == "__main__":
    key = jax.random.PRNGKey(0)

    batch = 4                     # -> group size G=2, grid=(2,) on this config
    Nv, Ne = 8, 16                # nodes, edges per graph
    nfeat_v, nfeat_e = 16, 8
    nhid, nclass = 32, 4

    kp, kd = jax.random.split(key)
    params = init_gcn_params(kp, nfeat_v, nfeat_e, nhid, nclass)

    X_list, Z_list, adj_e_list, adj_v_list, T_list = [], [], [], [], []
    for b in range(batch):
        kb = jax.random.fold_in(kd, b)
        k1, k2, k3, k4, k5 = jax.random.split(kb, 5)
        X_list.append(jax.random.normal(k1, (Nv, nfeat_v), dtype=jnp.float32))
        Z_list.append(jax.random.normal(k2, (Ne, nfeat_e), dtype=jnp.float32))
        # strictly positive adjacencies (avoids divide-by-zero in the
        # edge-layer col-max norm, matching the reference's implicit assumption)
        adj_e_list.append(jax.random.uniform(k3, (Ne, Ne), dtype=jnp.float32,
                                             minval=0.1, maxval=1.0))
        adj_v_list.append(jax.random.uniform(k4, (Nv, Nv), dtype=jnp.float32,
                                             minval=0.1, maxval=1.0))
        T_list.append((jax.random.uniform(k5, (Nv, Ne)) < 0.3).astype(jnp.float32))

    out = gcn_forward(params, X_list, Z_list, adj_e_list, adj_v_list, T_list)
    out = jax.block_until_ready(out)
    assert out.shape == (batch, Nv, nclass), out.shape
    assert bool(jnp.all(jnp.isfinite(out)))

    ref = _gcn_reference(params,
                         jnp.stack(X_list), jnp.stack(Z_list),
                         jnp.stack(adj_e_list), jnp.stack(adj_v_list),
                         jnp.stack(T_list))
    assert bool(jnp.allclose(out, ref, rtol=1e-2, atol=1e-2))

    print("KERNEL_OK")
</pallas_src>

<mosaic_0001>
module attributes {stable_mosaic.version = 11 : i64} {
  func.func @_gcn_grouped_kernel(%arg0: i32, %arg1: memref<16x16xf32, #tpu.memory_space<vmem>>, %arg2: memref<32x8xf32, #tpu.memory_space<vmem>>, %arg3: memref<2x16x16xf32, #tpu.memory_space<vmem>>, %arg4: memref<2x8x8xf32, #tpu.memory_space<vmem>>, %arg5: memref<2x8x16xf32, #tpu.memory_space<vmem>>, %arg6: memref<2x16x8xf32, #tpu.memory_space<vmem>>, %arg7: memref<16x32xf32, #tpu.memory_space<vmem>>, %arg8: memref<8x8xf32, #tpu.memory_space<vmem>>, %arg9: memref<32x128xf32, #tpu.memory_space<vmem>>, %arg10: memref<32x128xf32, #tpu.memory_space<vmem>>, %arg11: memref<16x128xf32, #tpu.memory_space<vmem>>, %arg12: memref<16x32xf32, #tpu.memory_space<vmem>>) attributes {dimension_semantics = [#tpu.dimension_semantics<parallel>], iteration_bounds = array<i64: 2>, scalar_prefetch = 0 : i64, scratch_operands = 1 : i64, tpu.core_type = #tpu.core_type<tc>, window_params = [{transform_indices = @transform_0, window_bounds = array<i64: 16, 16>}, {transform_indices = @transform_1, window_bounds = array<i64: 32, 8>}, {transform_indices = @transform_2, window_bounds = array<i64: 2, 16, 16>}, {transform_indices = @transform_3, window_bounds = array<i64: 2, 8, 8>}, {transform_indices = @transform_4, window_bounds = array<i64: 2, 8, 16>}, {transform_indices = @transform_5, window_bounds = array<i64: 2, 16, 8>}, {pipeline_mode = #tpu.pipeline_mode<synchronous>, transform_indices = @transform_6, window_bounds = array<i64: 16, 32>}, {pipeline_mode = #tpu.pipeline_mode<synchronous>, transform_indices = @transform_7, window_bounds = array<i64: 8, 8>}, {pipeline_mode = #tpu.pipeline_mode<synchronous>, transform_indices = @transform_8, window_bounds = array<i64: 32, 128>}, {pipeline_mode = #tpu.pipeline_mode<synchronous>, transform_indices = @transform_9, window_bounds = array<i64: 32, 128>}, {transform_indices = @transform_10, window_bounds = array<i64: 16, 128>}]} {
    %c0 = arith.constant 0 : index
    %c0_0 = arith.constant 0 : index
    %0 = vector.load %arg10[%c0, %c0_0] : memref<32x128xf32, #tpu.memory_space<vmem>>, vector<32x128xf32>
    %1 = vector.extract_strided_slice %0 {offsets = [0, 0], sizes = [1, 8], strides = [1, 1]} : vector<32x128xf32> to vector<1x8xf32>
    %2 = vector.extract_strided_slice %0 {offsets = [1, 0], sizes = [1, 32], strides = [1, 1]} : vector<32x128xf32> to vector<1x32xf32>
    %3 = vector.extract_strided_slice %0 {offsets = [2, 0], sizes = [1, 32], strides = [1, 1]} : vector<32x128xf32> to vector<1x32xf32>
    %4 = vector.extract_strided_slice %0 {offsets = [3, 0], sizes = [1, 8], strides = [1, 1]} : vector<32x128xf32> to vector<1x8xf32>
    %5 = vector.extract_strided_slice %0 {offsets = [4, 0], sizes = [1, 8], strides = [1, 1]} : vector<32x128xf32> to vector<1x8xf32>
    %6 = vector.extract_strided_slice %0 {offsets = [5, 0], sizes = [1, 128], strides = [1, 1]} : vector<32x128xf32> to vector<1x128xf32>
    %7 = vector.extract_strided_slice %0 {offsets = [8, 0], sizes = [16, 16], strides = [1, 1]} : vector<32x128xf32> to vector<16x16xf32>
    %cst = arith.constant 5.000000e-01 : f32
    %8 = vector.broadcast %cst : f32 to vector<16x16xf32>
    %9 = arith.cmpf ogt, %7, %8 : vector<16x16xf32>
    %10 = vector.extract_strided_slice %0 {offsets = [24, 0], sizes = [8, 8], strides = [1, 1]} : vector<32x128xf32> to vector<8x8xf32>
    %cst_1 = arith.constant 5.000000e-01 : f32
    %11 = vector.broadcast %cst_1 : f32 to vector<8x8xf32>
    %12 = arith.cmpf ogt, %10, %11 : vector<8x8xf32>
    %c0_2 = arith.constant 0 : index
    %c0_3 = arith.constant 0 : index
    %13 = vector.load %arg1[%c0_2, %c0_3] : memref<16x16xf32, #tpu.memory_space<vmem>>, vector<16x16xf32>
    %c0_4 = arith.constant 0 : index
    %c0_5 = arith.constant 0 : index
    %14 = vector.load %arg7[%c0_4, %c0_5] : memref<16x32xf32, #tpu.memory_space<vmem>>, vector<16x32xf32>
    %cst_6 = arith.constant dense<0.000000e+00> : vector<16x32xf32>
    %15 = tpu.matmul %13, %14, %cst_6 {dimension_numbers = #tpu.dot_dimension_numbers<[1], [0], [0], [1], [0, 0, 1, 1], [], []>} : vector<16x16xf32>, vector<16x32xf32>, vector<16x32xf32> -> vector<16x32xf32>
    %c0_7 = arith.constant 0 : index
    %c0_8 = arith.constant 0 : index
    %16 = vector.load %arg2[%c0_7, %c0_8] : memref<32x8xf32, #tpu.memory_space<vmem>>, vector<16x8xf32>
    %c0_9 = arith.constant 0 : index
    %c0_10 = arith.constant 0 : index
    %c0_11 = arith.constant 0 : index
    %17 = vector.load %arg5[%c0_9, %c0_10, %c0_11] : memref<2x8x16xf32, #tpu.memory_space<vmem>>, vector<1x8x16xf32>
    %18 = vector.shape_cast %17 : vector<1x8x16xf32> to vector<8x16xf32>
    %c0_12 = arith.constant 0 : index
    %c0_13 = arith.constant 0 : index
    %c0_14 = arith.constant 0 : index
    %19 = vector.load %arg6[%c0_12, %c0_13, %c0_14] : memref<2x16x8xf32, #tpu.memory_space<vmem>>, vector<1x16x8xf32>
    %20 = vector.shape_cast %19 : vector<1x16x8xf32> to vector<16x8xf32>
    %21 = vector.broadcast %1 : vector<1x8xf32> to vector<16x8xf32>
    %22 = arith.mulf %16, %21 : vector<16x8xf32>
    %cst_15 = arith.constant dense<0.000000e+00> : vector<16xf32>
    %23 = vector.multi_reduction <add>, %22, %cst_15 [1] : vector<16x8xf32> to vector<16xf32>
    %24 = vector.shape_cast %23 : vector<16xf32> to vector<16x1xf32>
    %25 = vector.broadcast %24 : vector<16x1xf32> to vector<16x8xf32>
    %26 = arith.mulf %25, %20 : vector<16x8xf32>
    %cst_16 = arith.constant dense<0.000000e+00> : vector<8x8xf32>
    %27 = tpu.matmul %18, %26, %cst_16 {dimension_numbers = #tpu.dot_dimension_numbers<[1], [0], [0], [1], [0, 0, 1, 1], [], []>} : vector<8x16xf32>, vector<16x8xf32>, vector<8x8xf32> -> vector<8x8xf32>
    %cst_17 = arith.constant 1.000000e+00 : f32
    %28 = vector.broadcast %cst_17 : f32 to vector<8x8xf32>
    %29 = arith.select %12, %28, %27 : vector<8x8xi1>, vector<8x8xf32>
    %c0_18 = arith.constant 0 : index
    %c0_19 = arith.constant 0 : index
    %c0_20 = arith.constant 0 : index
    %30 = vector.load %arg4[%c0_18, %c0_19, %c0_20] : memref<2x8x8xf32, #tpu.memory_space<vmem>>, vector<1x8x8xf32>
    %31 = vector.shape_cast %30 : vector<1x8x8xf32> to vector<8x8xf32>
    %32 = arith.mulf %29, %31 : vector<8x8xf32>
    %33 = vector.extract_strided_slice %15 {offsets = [0, 0], sizes = [8, 32], strides = [1, 1]} : vector<16x32xf32> to vector<8x32xf32>
    %cst_21 = arith.constant dense<0.000000e+00> : vector<8x32xf32>
    %34 = tpu.matmul %32, %33, %cst_21 {dimension_numbers = #tpu.dot_dimension_numbers<[1], [0], [0], [1], [0, 0, 1, 1], [], []>} : vector<8x8xf32>, vector<8x32xf32>, vector<8x32xf32> -> vector<8x32xf32>
    %35 = vector.broadcast %2 : vector<1x32xf32> to vector<8x32xf32>
    %36 = arith.addf %34, %35 : vector<8x32xf32>
    %cst_22 = arith.constant 0.000000e+00 : f32
    %37 = vector.broadcast %cst_22 : f32 to vector<8x32xf32>
    %38 = arith.maximumf %36, %37 : vector<8x32xf32>
    %c0_23 = arith.constant 0 : index
    %c0_24 = arith.constant 0 : index
    %39 = vector.load %arg12[%c0_23, %c0_24] : memref<16x32xf32, #tpu.memory_space<vmem>>, vector<8x32xf32>
    tpu.vector_store %arg12[%c0_23, %c0_24], %38 {strides = array<i32>} : memref<16x32xf32, #tpu.memory_space<vmem>>, vector<8x32xf32>,
    %c16 = arith.constant 16 : index
    %c0_25 = arith.constant 0 : index
    %40 = vector.load %arg2[%c16, %c0_25] : memref<32x8xf32, #tpu.memory_space<vmem>>, vector<16x8xf32>
    %c1 = arith.constant 1 : index
    %c0_26 = arith.constant 0 : index
    %c0_27 = arith.constant 0 : index
    %41 = vector.load %arg5[%c1, %c0_26, %c0_27] : memref<2x8x16xf32, #tpu.memory_space<vmem>>, vector<1x8x16xf32>
    %42 = vector.shape_cast %41 : vector<1x8x16xf32> to vector<8x16xf32>
    %c1_28 = arith.constant 1 : index
    %c0_29 = arith.constant 0 : index
    %c0_30 = arith.constant 0 : index
    %43 = vector.load %arg6[%c1_28, %c0_29, %c0_30] : memref<2x16x8xf32, #tpu.memory_space<vmem>>, vector<1x16x8xf32>
    %44 = vector.shape_cast %43 : vector<1x16x8xf32> to vector<16x8xf32>
    %45 = vector.broadcast %1 : vector<1x8xf32> to vector<16x8xf32>
    %46 = arith.mulf %40, %45 : vector<16x8xf32>
    %cst_31 = arith.constant dense<0.000000e+00> : vector<16xf32>
    %47 = vector.multi_reduction <add>, %46, %cst_31 [1] : vector<16x8xf32> to vector<16xf32>
    %48 = vector.shape_cast %47 : vector<16xf32> to vector<16x1xf32>
    %49 = vector.broadcast %48 : vector<16x1xf32> to vector<16x8xf32>
    %50 = arith.mulf %49, %44 : vector<16x8xf32>
    %cst_32 = arith.constant dense<0.000000e+00> : vector<8x8xf32>
    %51 = tpu.matmul %42, %50, %cst_32 {dimension_numbers = #tpu.dot_dimension_numbers<[1], [0], [0], [1], [0, 0, 1, 1], [], []>} : vector<8x16xf32>, vector<16x8xf32>, vector<8x8xf32> -> vector<8x8xf32>
    %cst_33 = arith.constant 1.000000e+00 : f32
    %52 = vector.broadcast %cst_33 : f32 to vector<8x8xf32>
    %53 = arith.select %12, %52, %51 : vector<8x8xi1>, vector<8x8xf32>
    %c1_34 = arith.constant 1 : index
    %c0_35 = arith.constant 0 : index
    %c0_36 = arith.constant 0 : index
    %54 = vector.load %arg4[%c1_34, %c0_35, %c0_36] : memref<2x8x8xf32, #tpu.memory_space<vmem>>, vector<1x8x8xf32>
    %55 = vector.shape_cast %54 : vector<1x8x8xf32> to vector<8x8xf32>
    %56 = arith.mulf %53, %55 : vector<8x8xf32>
    %57 = vector.extract_strided_slice %15 {offsets = [8, 0], sizes = [8, 32], strides = [1, 1]} : vector<16x32xf32> to vector<8x32xf32>
    %cst_37 = arith.constant dense<0.000000e+00> : vector<8x32xf32>
    %58 = tpu.matmul %56, %57, %cst_37 {dimension_numbers = #tpu.dot_dimension_numbers<[1], [0], [0], [1], [0, 0, 1, 1], [], []>} : vector<8x8xf32>, vector<8x32xf32>, vector<8x32xf32> -> vector<8x32xf32>
    %59 = vector.broadcast %2 : vector<1x32xf32> to vector<8x32xf32>
    %60 = arith.addf %58, %59 : vector<8x32xf32>
    %cst_38 = arith.constant 0.000000e+00 : f32
    %61 = vector.broadcast %cst_38 : f32 to vector<8x32xf32>
    %62 = arith.maximumf %60, %61 : vector<8x32xf32>
    %c8 = arith.constant 8 : index
    %c0_39 = arith.constant 0 : index
    %63 = vector.load %arg12[%c8, %c0_39] : memref<16x32xf32, #tpu.memory_space<vmem>>, vector<8x32xf32>
    tpu.vector_store %arg12[%c8, %c0_39], %62 {strides = array<i32>} : memref<16x32xf32, #tpu.memory_space<vmem>>, vector<8x32xf32>,
    %c0_40 = arith.constant 0 : index
    %c0_41 = arith.constant 0 : index
    %64 = vector.load %arg2[%c0_40, %c0_41] : memref<32x8xf32, #tpu.memory_space<vmem>>, vector<32x8xf32>
    %cst_42 = arith.constant 0.000000e+00 : f32
    %65 = vector.broadcast %cst_42 : f32 to vector<32x8xf32>
    %66 = arith.maximumf %64, %65 : vector<32x8xf32>
    %c0_43 = arith.constant 0 : index
    %c0_44 = arith.constant 0 : index
    %67 = vector.load %arg8[%c0_43, %c0_44] : memref<8x8xf32, #tpu.memory_space<vmem>>, vector<8x8xf32>
    %cst_45 = arith.constant dense<0.000000e+00> : vector<32x8xf32>
    %68 = tpu.matmul %66, %67, %cst_45 {dimension_numbers = #tpu.dot_dimension_numbers<[1], [0], [0], [1], [0, 0, 1, 1], [], []>} : vector<32x8xf32>, vector<8x8xf32>, vector<32x8xf32> -> vector<32x8xf32>
    %c0_46 = arith.constant 0 : index
    %c0_47 = arith.constant 0 : index
    %69 = vector.load %arg12[%c0_46, %c0_47] : memref<16x32xf32, #tpu.memory_space<vmem>>, vector<16x32xf32>
    %c0_48 = arith.constant 0 : index
    %c0_49 = arith.constant 0 : index
    %70 = vector.load %arg9[%c0_48, %c0_49] : memref<32x128xf32, #tpu.memory_space<vmem>>, vector<32x128xf32>
    %cst_50 = arith.constant dense<0.000000e+00> : vector<16x128xf32>
    %71 = tpu.matmul %69, %70, %cst_50 {dimension_numbers = #tpu.dot_dimension_numbers<[1], [0], [0], [1], [0, 0, 1, 1], [], []>} : vector<16x32xf32>, vector<32x128xf32>, vector<16x128xf32> -> vector<16x128xf32>
    %c0_51 = arith.constant 0 : index
    %c0_52 = arith.constant 0 : index
    %c0_53 = arith.constant 0 : index
    %72 = vector.load %arg5[%c0_51, %c0_52, %c0_53] : memref<2x8x16xf32, #tpu.memory_space<vmem>>, vector<1x8x16xf32>
    %73 = vector.shape_cast %72 : vector<1x8x16xf32> to vector<8x16xf32>
    %c0_54 = arith.constant 0 : index
    %c0_55 = arith.constant 0 : index
    %c0_56 = arith.constant 0 : index
    %74 = vector.load %arg6[%c0_54, %c0_55, %c0_56] : memref<2x16x8xf32, #tpu.memory_space<vmem>>, vector<1x16x8xf32>
    %75 = vector.shape_cast %74 : vector<1x16x8xf32> to vector<16x8xf32>
    %76 = vector.extract_strided_slice %69 {offsets = [0, 0], sizes = [8, 32], strides = [1, 1]} : vector<16x32xf32> to vector<8x32xf32>
    %77 = vector.broadcast %3 : vector<1x32xf32> to vector<8x32xf32>
    %78 = arith.mulf %76, %77 : vector<8x32xf32>
    %cst_57 = arith.constant dense<0.000000e+00> : vector<8xf32>
    %79 = vector.multi_reduction <add>, %78, %cst_57 [1] : vector<8x32xf32> to vector<8xf32>
    %80 = vector.shape_cast %79 : vector<8xf32> to vector<8x1xf32>
    %81 = vector.broadcast %80 : vector<8x1xf32> to vector<8x16xf32>
    %82 = arith.mulf %81, %73 : vector<8x16xf32>
    %cst_58 = arith.constant dense<0.000000e+00> : vector<16x16xf32>
    %83 = tpu.matmul %75, %82, %cst_58 {dimension_numbers = #tpu.dot_dimension_numbers<[1], [0], [0], [1], [0, 0, 1, 1], [], []>} : vector<16x8xf32>, vector<8x16xf32>, vector<16x16xf32> -> vector<16x16xf32>
    %cst_59 = arith.constant 1.000000e+00 : f32
    %84 = vector.broadcast %cst_59 : f32 to vector<16x16xf32>
    %85 = arith.select %9, %84, %83 : vector<16x16xi1>, vector<16x16xf32>
    %c0_60 = arith.constant 0 : index
    %c0_61 = arith.constant 0 : index
    %c0_62 = arith.constant 0 : index
    %86 = vector.load %arg3[%c0_60, %c0_61, %c0_62] : memref<2x16x16xf32, #tpu.memory_space<vmem>>, vector<1x16x16xf32>
    %87 = vector.shape_cast %86 : vector<1x16x16xf32> to vector<16x16xf32>
    %88 = arith.mulf %85, %87 : vector<16x16xf32>
    %cst_63 = arith.constant dense<0xFF800000> : vector<16xf32>
    %89 = vector.multi_reduction <maximumf>, %88, %cst_63 [0] : vector<16x16xf32> to vector<16xf32>
    %90 = vector.shape_cast %89 : vector<16xf32> to vector<1x16xf32>
    %91 = vector.broadcast %90 : vector<1x16xf32> to vector<16x16xf32>
    %92 = arith.divf %88, %91 : vector<16x16xf32>
    %93 = vector.extract_strided_slice %68 {offsets = [0, 0], sizes = [16, 8], strides = [1, 1]} : vector<32x8xf32> to vector<16x8xf32>
    %cst_64 = arith.constant dense<0.000000e+00> : vector<16x8xf32>
    %94 = tpu.matmul %92, %93, %cst_64 {dimension_numbers = #tpu.dot_dimension_numbers<[1], [0], [0], [1], [0, 0, 1, 1], [], []>} : vector<16x16xf32>, vector<16x8xf32>, vector<16x8xf32> -> vector<16x8xf32>
    %95 = vector.broadcast %4 : vector<1x8xf32> to vector<16x8xf32>
    %96 = arith.addf %94, %95 : vector<16x8xf32>
    %cst_65 = arith.constant 0.000000e+00 : f32
    %97 = vector.broadcast %cst_65 : f32 to vector<16x8xf32>
    %98 = arith.maximumf %96, %97 : vector<16x8xf32>
    %99 = vector.broadcast %5 : vector<1x8xf32> to vector<16x8xf32>
    %100 = arith.mulf %98, %99 : vector<16x8xf32>
    %cst_66 = arith.constant dense<0.000000e+00> : vector<16xf32>
    %101 = vector.multi_reduction <add>, %100, %cst_66 [1] : vector<16x8xf32> to vector<16xf32>
    %102 = vector.shape_cast %101 : vector<16xf32> to vector<16x1xf32>
    %103 = vector.broadcast %102 : vector<16x1xf32> to vector<16x8xf32>
    %104 = arith.mulf %103, %75 : vector<16x8xf32>
    %cst_67 = arith.constant dense<0.000000e+00> : vector<8x8xf32>
    %105 = tpu.matmul %73, %104, %cst_67 {dimension_numbers = #tpu.dot_dimension_numbers<[1], [0], [0], [1], [0, 0, 1, 1], [], []>} : vector<8x16xf32>, vector<16x8xf32>, vector<8x8xf32> -> vector<8x8xf32>
    %cst_68 = arith.constant 1.000000e+00 : f32
    %106 = vector.broadcast %cst_68 : f32 to vector<8x8xf32>
    %107 = arith.select %12, %106, %105 : vector<8x8xi1>, vector<8x8xf32>
    %c0_69 = arith.constant 0 : index
    %c0_70 = arith.constant 0 : index
    %c0_71 = arith.constant 0 : index
    %108 = vector.load %arg4[%c0_69, %c0_70, %c0_71] : memref<2x8x8xf32, #tpu.memory_space<vmem>>, vector<1x8x8xf32>
    %109 = vector.shape_cast %108 : vector<1x8x8xf32> to vector<8x8xf32>
    %110 = arith.mulf %107, %109 : vector<8x8xf32>
    %111 = vector.extract_strided_slice %71 {offsets = [0, 0], sizes = [8, 128], strides = [1, 1]} : vector<16x128xf32> to vector<8x128xf32>
    %cst_72 = arith.constant dense<0.000000e+00> : vector<8x128xf32>
    %112 = tpu.matmul %110, %111, %cst_72 {dimension_numbers = #tpu.dot_dimension_numbers<[1], [0], [0], [1], [0, 0, 1, 1], [], []>} : vector<8x8xf32>, vector<8x128xf32>, vector<8x128xf32> -> vector<8x128xf32>
    %113 = vector.broadcast %6 : vector<1x128xf32> to vector<8x128xf32>
    %114 = arith.addf %112, %113 : vector<8x128xf32>
    %c0_73 = arith.constant 0 : index
    %c0_74 = arith.constant 0 : index
    %115 = vector.load %arg11[%c0_73, %c0_74] : memref<16x128xf32, #tpu.memory_space<vmem>>, vector<8x128xf32>
    tpu.vector_store %arg11[%c0_73, %c0_74], %114 {strides = array<i32>} : memref<16x128xf32, #tpu.memory_space<vmem>>, vector<8x128xf32>,
    %c1_75 = arith.constant 1 : index
    %c0_76 = arith.constant 0 : index
    %c0_77 = arith.constant 0 : index
    %116 = vector.load %arg5[%c1_75, %c0_76, %c0_77] : memref<2x8x16xf32, #tpu.memory_space<vmem>>, vector<1x8x16xf32>
    %117 = vector.shape_cast %116 : vector<1x8x16xf32> to vector<8x16xf32>
    %c1_78 = arith.constant 1 : index
    %c0_79 = arith.constant 0 : index
    %c0_80 = arith.constant 0 : index
    %118 = vector.load %arg6[%c1_78, %c0_79, %c0_80] : memref<2x16x8xf32, #tpu.memory_space<vmem>>, vector<1x16x8xf32>
    %119 = vector.shape_cast %118 : vector<1x16x8xf32> to vector<16x8xf32>
    %120 = vector.extract_strided_slice %69 {offsets = [8, 0], sizes = [8, 32], strides = [1, 1]} : vector<16x32xf32> to vector<8x32xf32>
    %121 = vector.broadcast %3 : vector<1x32xf32> to vector<8x32xf32>
    %122 = arith.mulf %120, %121 : vector<8x32xf32>
    %cst_81 = arith.constant dense<0.000000e+00> : vector<8xf32>
    %123 = vector.multi_reduction <add>, %122, %cst_81 [1] : vector<8x32xf32> to vector<8xf32>
    %124 = vector.shape_cast %123 : vector<8xf32> to vector<8x1xf32>
    %125 = vector.broadcast %124 : vector<8x1xf32> to vector<8x16xf32>
    %126 = arith.mulf %125, %117 : vector<8x16xf32>
    %cst_82 = arith.constant dense<0.000000e+00> : vector<16x16xf32>
    %127 = tpu.matmul %119, %126, %cst_82 {dimension_numbers = #tpu.dot_dimension_numbers<[1], [0], [0], [1], [0, 0, 1, 1], [], []>} : vector<16x8xf32>, vector<8x16xf32>, vector<16x16xf32> -> vector<16x16xf32>
    %cst_83 = arith.constant 1.000000e+00 : f32
    %128 = vector.broadcast %cst_83 : f32 to vector<16x16xf32>
    %129 = arith.select %9, %128, %127 : vector<16x16xi1>, vector<16x16xf32>
    %c1_84 = arith.constant 1 : index
    %c0_85 = arith.constant 0 : index
    %c0_86 = arith.constant 0 : index
    %130 = vector.load %arg3[%c1_84, %c0_85, %c0_86] : memref<2x16x16xf32, #tpu.memory_space<vmem>>, vector<1x16x16xf32>
    %131 = vector.shape_cast %130 : vector<1x16x16xf32> to vector<16x16xf32>
    %132 = arith.mulf %129, %131 : vector<16x16xf32>
    %cst_87 = arith.constant dense<0xFF800000> : vector<16xf32>
    %133 = vector.multi_reduction <maximumf>, %132, %cst_87 [0] : vector<16x16xf32> to vector<16xf32>
    %134 = vector.shape_cast %133 : vector<16xf32> to vector<1x16xf32>
    %135 = vector.broadcast %134 : vector<1x16xf32> to vector<16x16xf32>
    %136 = arith.divf %132, %135 : vector<16x16xf32>
    %137 = vector.extract_strided_slice %68 {offsets = [16, 0], sizes = [16, 8], strides = [1, 1]} : vector<32x8xf32> to vector<16x8xf32>
    %cst_88 = arith.constant dense<0.000000e+00> : vector<16x8xf32>
    %138 = tpu.matmul %136, %137, %cst_88 {dimension_numbers = #tpu.dot_dimension_numbers<[1], [0], [0], [1], [0, 0, 1, 1], [], []>} : vector<16x16xf32>, vector<16x8xf32>, vector<16x8xf32> -> vector<16x8xf32>
    %139 = vector.broadcast %4 : vector<1x8xf32> to vector<16x8xf32>
    %140 = arith.addf %138, %139 : vector<16x8xf32>
    %cst_89 = arith.constant 0.000000e+00 : f32
    %141 = vector.broadcast %cst_89 : f32 to vector<16x8xf32>
    %142 = arith.maximumf %140, %141 : vector<16x8xf32>
    %143 = vector.broadcast %5 : vector<1x8xf32> to vector<16x8xf32>
    %144 = arith.mulf %142, %143 : vector<16x8xf32>
    %cst_90 = arith.constant dense<0.000000e+00> : vector<16xf32>
    %145 = vector.multi_reduction <add>, %144, %cst_90 [1] : vector<16x8xf32> to vector<16xf32>
    %146 = vector.shape_cast %145 : vector<16xf32> to vector<16x1xf32>
    %147 = vector.broadcast %146 : vector<16x1xf32> to vector<16x8xf32>
    %148 = arith.mulf %147, %119 : vector<16x8xf32>
    %cst_91 = arith.constant dense<0.000000e+00> : vector<8x8xf32>
    %149 = tpu.matmul %117, %148, %cst_91 {dimension_numbers = #tpu.dot_dimension_numbers<[1], [0], [0], [1], [0, 0, 1, 1], [], []>} : vector<8x16xf32>, vector<16x8xf32>, vector<8x8xf32> -> vector<8x8xf32>
    %cst_92 = arith.constant 1.000000e+00 : f32
    %150 = vector.broadcast %cst_92 : f32 to vector<8x8xf32>
    %151 = arith.select %12, %150, %149 : vector<8x8xi1>, vector<8x8xf32>
    %c1_93 = arith.constant 1 : index
    %c0_94 = arith.constant 0 : index
    %c0_95 = arith.constant 0 : index
    %152 = vector.load %arg4[%c1_93, %c0_94, %c0_95] : memref<2x8x8xf32, #tpu.memory_space<vmem>>, vector<1x8x8xf32>
    %153 = vector.shape_cast %152 : vector<1x8x8xf32> to vector<8x8xf32>
    %154 = arith.mulf %151, %153 : vector<8x8xf32>
    %155 = vector.extract_strided_slice %71 {offsets = [8, 0], sizes = [8, 128], strides = [1, 1]} : vector<16x128xf32> to vector<8x128xf32>
    %cst_96 = arith.constant dense<0.000000e+00> : vector<8x128xf32>
    %156 = tpu.matmul %154, %155, %cst_96 {dimension_numbers = #tpu.dot_dimension_numbers<[1], [0], [0], [1], [0, 0, 1, 1], [], []>} : vector<8x8xf32>, vector<8x128xf32>, vector<8x128xf32> -> vector<8x128xf32>
    %157 = vector.broadcast %6 : vector<1x128xf32> to vector<8x128xf32>
    %158 = arith.addf %156, %157 : vector<8x128xf32>
    %c8_97 = arith.constant 8 : index
    %c0_98 = arith.constant 0 : index
    %159 = vector.load %arg11[%c8_97, %c0_98] : memref<16x128xf32, #tpu.memory_space<vmem>>, vector<8x128xf32>
    tpu.vector_store %arg11[%c8_97, %c0_98], %158 {strides = array<i32>} : memref<16x128xf32, #tpu.memory_space<vmem>>, vector<8x128xf32>,
    return
  }
  func.func @transform_0(%arg0: i32) -> (i32, i32) {
    %c0_i32 = arith.constant 0 : i32
    %c0_i32_0 = arith.constant 0 : i32
    return %arg0, %c0_i32 : i32, i32
  }
  func.func @transform_1(%arg0: i32) -> (i32, i32) {
    %c0_i32 = arith.constant 0 : i32
    %c0_i32_0 = arith.constant 0 : i32
    return %arg0, %c0_i32 : i32, i32
  }
  func.func @transform_2(%arg0: i32) -> (i32, i32, i32) {
    %c0_i32 = arith.constant 0 : i32
    %c0_i32_0 = arith.constant 0 : i32
    %c0_i32_1 = arith.constant 0 : i32
    return %arg0, %c0_i32, %c0_i32_0 : i32, i32, i32
  }
  func.func @transform_3(%arg0: i32) -> (i32, i32, i32) {
    %c0_i32 = arith.constant 0 : i32
    %c0_i32_0 = arith.constant 0 : i32
    %c0_i32_1 = arith.constant 0 : i32
    return %arg0, %c0_i32, %c0_i32_0 : i32, i32, i32
  }
  func.func @transform_4(%arg0: i32) -> (i32, i32, i32) {
    %c0_i32 = arith.constant 0 : i32
    %c0_i32_0 = arith.constant 0 : i32
    %c0_i32_1 = arith.constant 0 : i32
    return %arg0, %c0_i32, %c0_i32_0 : i32, i32, i32
  }
  func.func @transform_5(%arg0: i32) -> (i32, i32, i32) {
    %c0_i32 = arith.constant 0 : i32
    %c0_i32_0 = arith.constant 0 : i32
    %c0_i32_1 = arith.constant 0 : i32
    return %arg0, %c0_i32, %c0_i32_0 : i32, i32, i32
  }
  func.func @transform_6(%arg0: i32) -> (i32, i32) {
    %c0_i32 = arith.constant 0 : i32
    %c0_i32_0 = arith.constant 0 : i32
    %c0_i32_1 = arith.constant 0 : i32
    return %c0_i32, %c0_i32_0 : i32, i32
  }
  func.func @transform_7(%arg0: i32) -> (i32, i32) {
    %c0_i32 = arith.constant 0 : i32
    %c0_i32_0 = arith.constant 0 : i32
    %c0_i32_1 = arith.constant 0 : i32
    return %c0_i32, %c0_i32_0 : i32, i32
  }
  func.func @transform_8(%arg0: i32) -> (i32, i32) {
    %c0_i32 = arith.constant 0 : i32
    %c0_i32_0 = arith.constant 0 : i32
    %c0_i32_1 = arith.constant 0 : i32
    return %c0_i32, %c0_i32_0 : i32, i32
  }
  func.func @transform_9(%arg0: i32) -> (i32, i32) {
    %c0_i32 = arith.constant 0 : i32
    %c0_i32_0 = arith.constant 0 : i32
    %c0_i32_1 = arith.constant 0 : i32
    return %c0_i32, %c0_i32_0 : i32, i32
  }
  func.func @transform_10(%arg0: i32) -> (i32, i32) {
    %c0_i32 = arith.constant 0 : i32
    %c0_i32_0 = arith.constant 0 : i32
    return %arg0, %c0_i32 : i32, i32
  }
}

</mosaic_0001>

<llo_original>
// kernel: _gcn_batched.1
$region0: #{_gcn_batched.1}
  #allocation0 [shape = 'u32[]', space=smem, size = 0x4, offset = 0x4, fixed_abs, tag = 'smem constant byte address 0x4 - core index']
  #allocation1 [shape = 'u32[144,128]{1,0:T(1,128)}', space=vmem, size = 0x12000, scoped, tag = 'internal scratch']
  #allocation2 [shape = 'f32[16,32]{1,0:T(8,128)}', space=vmem, size = 0x2000, scoped, tag = 'scratch operand']
  %s0 = inlined_call_operand.vmem [shape: f32[32,16], index: 0, kind: input, shape index: {}]
  %s1 = inlined_call_operand.vmem [shape: f32[64,8], index: 1, kind: input, shape index: {}]
  %s2 = inlined_call_operand.vmem [shape: f32[4,16,16], index: 2, kind: input, shape index: {}]
  %s3 = inlined_call_operand.vmem [shape: f32[4,8,8], index: 3, kind: input, shape index: {}]
  %s4 = inlined_call_operand.vmem [shape: f32[4,8,16], index: 4, kind: input, shape index: {}]
  %s5 = inlined_call_operand.vmem [shape: f32[4,16,8], index: 5, kind: input, shape index: {}]
  %s6 = inlined_call_operand.vmem [shape: f32[16,32], index: 6, kind: input, shape index: {}]
  %s7 = inlined_call_operand.vmem [shape: f32[8,8], index: 7, kind: input, shape index: {}]
  %s8 = inlined_call_operand.vmem [shape: f32[32,128], index: 8, kind: input, shape index: {}]
  %s9 = inlined_call_operand.vmem [shape: f32[32,128], index: 9, kind: input, shape index: {}]
  %s10 = inlined_call_operand.vmem [shape: f32[32,128], index: 10, kind: output, shape index: {}]
  %s11 = sld [smem:[#allocation0]]
  $region73: #{_gcn_batched.1} parent=0
    _
  %s13 = ssub.s32 1, %s11
  %s14 = scalar_select 0, %s13, %s11
  loop: start=0, step=1, limit=4
  $region2: #{_gcn_batched.1} parent=0 // loop_pre_header
    _
  $region3: #{_gcn_batched.1} parent=0 // loop_header
    %s16 = sphi 0, %s20
    %p17 = scmp.ge.s32.totalorder %s16, 4
    %s26 = sphi 0, %s28
    %s29 = sphi 0, %s26
    %s30 = sphi 0, %s29
    %s46 = sphi 0, %s30
    %s52 = sphi 0, %s54
    %s55 = sphi 0, %s52
    %s56 = sphi 0, %s55
    %s72 = sphi 0, %s56
    %s78 = sphi 0, %s80
    %s81 = sphi 0, %s78
    %s82 = sphi 0, %s81
    %s98 = sphi 0, %s82
    %s104 = sphi 0, %s106
    %s107 = sphi 0, %s104
    %s108 = sphi 0, %s107
    %s124 = sphi 0, %s108
    %s130 = sphi 0, %s132
    %s133 = sphi 0, %s130
    %s134 = sphi 0, %s133
    %s150 = sphi 0, %s134
    %s156 = sphi 0, %s158
    %s159 = sphi 0, %s156
    %s160 = sphi 0, %s159
    %s176 = sphi 0, %s160
    %s180 = sphi 0, %s180
    %s182 = sphi 0, %s180
    %s183 = sphi 0, %s182
    %s197 = sphi 0, %s183
    %s201 = sphi 0, %s201
    %s203 = sphi 0, %s201
    %s204 = sphi 0, %s203
    %s218 = sphi 0, %s204
    %s222 = sphi 0, %s222
    %s224 = sphi 0, %s222
    %s225 = sphi 0, %s224
    %s239 = sphi 0, %s225
    %s243 = sphi 0, %s243
    %s245 = sphi 0, %s243
    %s246 = sphi 0, %s245
    %s260 = sphi 0, %s246
    %s266 = sphi 0, %s268
    %s269 = sphi 0, %s266
    %s270 = sphi 0, %s269
    %s286 = sphi 0, %s270
  $region4: #{_gcn_batched.1} parent=0 // loop_header_branch
    %19 = sbr.rel (%p17) target = $region8
  $region5: #{_gcn_batched.1} parent=0 // loop_body
    %s21 = ssub.s32 %s16, 1
    %s22 = ssub.s32 %s16, 2
    %s23 = sadd.s32 %s16, 1
    %s24 = ssub.s32 %s16, %s23
    %p25 = scmp.eq.s32.totalorder %s24, 0
    %s27 = sadd.s32 %s26, 1
    %s28 = scalar_select %p25, %s26, %s27
    %p31 = pneg %p25
    %p32 = scmp.eq.s32.totalorder %s16, 1
    %p33 = por %p31, %p32
    %p34 = scmp.ne.s32.totalorder %s26, %s29
    %p35 = scmp.eq.s32.totalorder %s16, 0
    %p36 = por %p34, %p35
    %p37 = scmp.ne.s32.totalorder %s26, %s29
    %p38 = scmp.eq.s32.totalorder %s21, 1
    %p39 = por %p37, %p38
    %p40 = scmp.ne.s32.totalorder %s29, %s30
    %p41 = scmp.eq.s32.totalorder %s21, 0
    %p42 = por %p40, %p41
    %p43 = scmp.ne.s32.totalorder %s29, %s30
    %p44 = scmp.eq.s32.totalorder %s22, 1
    %p45 = por %p43, %p44
    %p47 = scmp.ne.s32.totalorder %s30, %s46
    %p48 = scmp.eq.s32.totalorder %s22, 0
    %p49 = por %p47, %p48
    %s50 = ssub.s32 %s16, %s23
    %p51 = scmp.eq.s32.totalorder %s50, 0
    %s53 = sadd.s32 %s52, 1
    %s54 = scalar_select %p51, %s52, %s53
    %p57 = pneg %p51
    %p58 = scmp.eq.s32.totalorder %s16, 1
    %p59 = por %p57, %p58
    %p60 = scmp.ne.s32.totalorder %s52, %s55
    %p61 = scmp.eq.s32.totalorder %s16, 0
    %p62 = por %p60, %p61
    %p63 = scmp.ne.s32.totalorder %s52, %s55
    %p64 = scmp.eq.s32.totalorder %s21, 1
    %p65 = por %p63, %p64
    %p66 = scmp.ne.s32.totalorder %s55, %s56
    %p67 = scmp.eq.s32.totalorder %s21, 0
    %p68 = por %p66, %p67
    %p69 = scmp.ne.s32.totalorder %s55, %s56
    %p70 = scmp.eq.s32.totalorder %s22, 1
    %p71 = por %p69, %p70
    %p73 = scmp.ne.s32.totalorder %s56, %s72
    %p74 = scmp.eq.s32.totalorder %s22, 0
    %p75 = por %p73, %p74
    %s76 = ssub.s32 %s16, %s23
    %p77 = scmp.eq.s32.totalorder %s76, 0
    %s79 = sadd.s32 %s78, 1
    %s80 = scalar_select %p77, %s78, %s79
    %p83 = pneg %p77
    %p84 = scmp.eq.s32.totalorder %s16, 1
    %p85 = por %p83, %p84
    %p86 = scmp.ne.s32.totalorder %s78, %s81
    %p87 = scmp.eq.s32.totalorder %s16, 0
    %p88 = por %p86, %p87
    %p89 = scmp.ne.s32.totalorder %s78, %s81
    %p90 = scmp.eq.s32.totalorder %s21, 1
    %p91 = por %p89, %p90
    %p92 = scmp.ne.s32.totalorder %s81, %s82
    %p93 = scmp.eq.s32.totalorder %s21, 0
    %p94 = por %p92, %p93
    %p95 = scmp.ne.s32.totalorder %s81, %s82
    %p96 = scmp.eq.s32.totalorder %s22, 1
    %p97 = por %p95, %p96
    %p99 = scmp.ne.s32.totalorder %s82, %s98
    %p100 = scmp.eq.s32.totalorder %s22, 0
    %p101 = por %p99, %p100
    %s102 = ssub.s32 %s16, %s23
    %p103 = scmp.eq.s32.totalorder %s102, 0
    %s105 = sadd.s32 %s104, 1
    %s106 = scalar_select %p103, %s104, %s105
    %p109 = pneg %p103
    %p110 = scmp.eq.s32.totalorder %s16, 1
    %p111 = por %p109, %p110
    %p112 = scmp.ne.s32.totalorder %s104, %s107
    %p113 = scmp.eq.s32.totalorder %s16, 0
    %p114 = por %p112, %p113
    %p115 = scmp.ne.s32.totalorder %s104, %s107
    %p116 = scmp.eq.s32.totalorder %s21, 1
    %p117 = por %p115, %p116
    %p118 = scmp.ne.s32.totalorder %s107, %s108
    %p119 = scmp.eq.s32.totalorder %s21, 0
    %p120 = por %p118, %p119
    %p121 = scmp.ne.s32.totalorder %s107, %s108
    %p122 = scmp.eq.s32.totalorder %s22, 1
    %p123 = por %p121, %p122
    %p125 = scmp.ne.s32.totalorder %s108, %s124
    %p126 = scmp.eq.s32.totalorder %s22, 0
    %p127 = por %p125, %p126
    %s128 = ssub.s32 %s16, %s23
    %p129 = scmp.eq.s32.totalorder %s128, 0
    %s131 = sadd.s32 %s130, 1
    %s132 = scalar_select %p129, %s130, %s131
    %p135 = pneg %p129
    %p136 = scmp.eq.s32.totalorder %s16, 1
    %p137 = por %p135, %p136
    %p138 = scmp.ne.s32.totalorder %s130, %s133
    %p139 = scmp.eq.s32.totalorder %s16, 0
    %p140 = por %p138, %p139
    %p141 = scmp.ne.s32.totalorder %s130, %s133
    %p142 = scmp.eq.s32.totalorder %s21, 1
    %p143 = por %p141, %p142
    %p144 = scmp.ne.s32.totalorder %s133, %s134
    %p145 = scmp.eq.s32.totalorder %s21, 0
    %p146 = por %p144, %p145
    %p147 = scmp.ne.s32.totalorder %s133, %s134
    %p148 = scmp.eq.s32.totalorder %s22, 1
    %p149 = por %p147, %p148
    %p151 = scmp.ne.s32.totalorder %s134, %s150
    %p152 = scmp.eq.s32.totalorder %s22, 0
    %p153 = por %p151, %p152
    %s154 = ssub.s32 %s16, %s23
    %p155 = scmp.eq.s32.totalorder %s154, 0
    %s157 = sadd.s32 %s156, 1
    %s158 = scalar_select %p155, %s156, %s157
    %p161 = pneg %p155
    %p162 = scmp.eq.s32.totalorder %s16, 1
    %p163 = por %p161, %p162
    %p164 = scmp.ne.s32.totalorder %s156, %s159
    %p165 = scmp.eq.s32.totalorder %s16, 0
    %p166 = por %p164, %p165
    %p167 = scmp.ne.s32.totalorder %s156, %s159
    %p168 = scmp.eq.s32.totalorder %s21, 1
    %p169 = por %p167, %p168
    %p170 = scmp.ne.s32.totalorder %s159, %s160
    %p171 = scmp.eq.s32.totalorder %s21, 0
    %p172 = por %p170, %p171
    %p173 = scmp.ne.s32.totalorder %s159, %s160
    %p174 = scmp.eq.s32.totalorder %s22, 1
    %p175 = por %p173, %p174
    %p177 = scmp.ne.s32.totalorder %s160, %s176
    %p178 = scmp.eq.s32.totalorder %s22, 0
    %p179 = por %p177, %p178
    %s181 = sadd.s32 %s180, 1
    %p184 = scmp.eq.s32.totalorder %s16, 1
    %p185 = scmp.ne.s32.totalorder %s180, %s182
    %p186 = scmp.eq.s32.totalorder %s16, 0
    %p187 = por %p185, %p186
    %p188 = scmp.ne.s32.totalorder %s180, %s182
    %p189 = scmp.eq.s32.totalorder %s21, 1
    %p190 = por %p188, %p189
    %p191 = scmp.ne.s32.totalorder %s182, %s183
    %p192 = scmp.eq.s32.totalorder %s21, 0
    %p193 = por %p191, %p192
    %p194 = scmp.ne.s32.totalorder %s182, %s183
    %p195 = scmp.eq.s32.totalorder %s22, 1
    %p196 = por %p194, %p195
    %p198 = scmp.ne.s32.totalorder %s183, %s197
    %p199 = scmp.eq.s32.totalorder %s22, 0
    %p200 = por %p198, %p199
    %s202 = sadd.s32 %s201, 1
    %p205 = scmp.eq.s32.totalorder %s16, 1
    %p206 = scmp.ne.s32.totalorder %s201, %s203
    %p207 = scmp.eq.s32.totalorder %s16, 0
    %p208 = por %p206, %p207
    %p209 = scmp.ne.s32.totalorder %s201, %s203
    %p210 = scmp.eq.s32.totalorder %s21, 1
    %p211 = por %p209, %p210
    %p212 = scmp.ne.s32.totalorder %s203, %s204
    %p213 = scmp.eq.s32.totalorder %s21, 0
    %p214 = por %p212, %p213
    %p215 = scmp.ne.s32.totalorder %s203, %s204
    %p216 = scmp.eq.s32.totalorder %s22, 1
    %p217 = por %p215, %p216
    %p219 = scmp.ne.s32.totalorder %s204, %s218
    %p220 = scmp.eq.s32.totalorder %s22, 0
    %p221 = por %p219, %p220
    %s223 = sadd.s32 %s222, 1
    %p226 = scmp.eq.s32.totalorder %s16, 1
    %p227 = scmp.ne.s32.totalorder %s222, %s224
    %p228 = scmp.eq.s32.totalorder %s16, 0
    %p229 = por %p227, %p228
    %p230 = scmp.ne.s32.totalorder %s222, %s224
    %p231 = scmp.eq.s32.totalorder %s21, 1
    %p232 = por %p230, %p231
    %p233 = scmp.ne.s32.totalorder %s224, %s225
    %p234 = scmp.eq.s32.totalorder %s21, 0
    %p235 = por %p233, %p234
    %p236 = scmp.ne.s32.totalorder %s224, %s225
    %p237 = scmp.eq.s32.totalorder %s22, 1
    %p238 = por %p236, %p237
    %p240 = scmp.ne.s32.totalorder %s225, %s239
    %p241 = scmp.eq.s32.totalorder %s22, 0
    %p242 = por %p240, %p241
    %s244 = sadd.s32 %s243, 1
    %p247 = scmp.eq.s32.totalorder %s16, 1
    %p248 = scmp.ne.s32.totalorder %s243, %s245
    %p249 = scmp.eq.s32.totalorder %s16, 0
    %p250 = por %p248, %p249
    %p251 = scmp.ne.s32.totalorder %s243, %s245
    %p252 = scmp.eq.s32.totalorder %s21, 1
    %p253 = por %p251, %p252
    %p254 = scmp.ne.s32.totalorder %s245, %s246
    %p255 = scmp.eq.s32.totalorder %s21, 0
    %p256 = por %p254, %p255
    %p257 = scmp.ne.s32.totalorder %s245, %s246
    %p258 = scmp.eq.s32.totalorder %s22, 1
    %p259 = por %p257, %p258
    %p261 = scmp.ne.s32.totalorder %s246, %s260
    %p262 = scmp.eq.s32.totalorder %s22, 0
    %p263 = por %p261, %p262
    %s264 = ssub.s32 %s16, %s23
    %p265 = scmp.eq.s32.totalorder %s264, 0
    %s267 = sadd.s32 %s266, 1
    %s268 = scalar_select %p265, %s266, %s267
    %p271 = pneg %p265
    %p272 = scmp.eq.s32.totalorder %s16, 1
    %p273 = por %p271, %p272
    %p274 = scmp.ne.s32.totalorder %s266, %s269
    %p275 = scmp.eq.s32.totalorder %s16, 0
    %p276 = por %p274, %p275
    %p277 = scmp.ne.s32.totalorder %s266, %s269
    %p278 = scmp.eq.s32.totalorder %s21, 1
    %p279 = por %p277, %p278
    %p280 = scmp.ne.s32.totalorder %s269, %s270
    %p281 = scmp.eq.s32.totalorder %s21, 0
    %p282 = por %p280, %p281
    %p283 = scmp.ne.s32.totalorder %s269, %s270
    %p284 = scmp.eq.s32.totalorder %s22, 1
    %p285 = por %p283, %p284
    %p287 = scmp.ne.s32.totalorder %s270, %s286
    %p288 = scmp.eq.s32.totalorder %s22, 0
    %p289 = por %p287, %p288
    %p290 = scmp.le.s32.totalorder 1, %s16
    %p291 = scmp.lt.s32.totalorder %s16, 3
    %p292 = pnand %p290, %p291
    %p293 = pneg %p292
    // Predicated region
    $region9: #{_gcn_batched.1} parent=5 // pred_check
      _
    $region10: #{_gcn_batched.1} parent=5 // pred_check_branch
      %295 = sbr.rel (%p292) target = $region12
    $region11: #{_gcn_batched.1} parent=5 // pred_region
      %s296 = ssub.s32 %s16, 1
      // Predicated region
      $region13: #{_gcn_batched.1} parent=11 // pred_check
        %p297 = pneg %p193
      $region14: #{_gcn_batched.1} parent=11 // pred_check_branch
        %299 = sbr.rel (%p297) target = $region16
      $region15: #{_gcn_batched.1} parent=11 // pred_region
        _
      $region16: #{_gcn_batched.1} parent=11 // pred_fallthru
        _
      // Predicated region
      $region17: #{_gcn_batched.1} parent=11 // pred_check
        %p300 = pneg %p214
      $region18: #{_gcn_batched.1} parent=11 // pred_check_branch
        %302 = sbr.rel (%p300) target = $region20
      $region19: #{_gcn_batched.1} parent=11 // pred_region
        _
      $region20: #{_gcn_batched.1} parent=11 // pred_fallthru
        _
      // Predicated region
      $region21: #{_gcn_batched.1} parent=11 // pred_check
        %p303 = pneg %p235
      $region22: #{_gcn_batched.1} parent=11 // pred_check_branch
        %305 = sbr.rel (%p303) target = $region24
      $region23: #{_gcn_batched.1} parent=11 // pred_region
        _
      $region24: #{_gcn_batched.1} parent=11 // pred_fallthru
        _
      // Predicated region
      $region25: #{_gcn_batched.1} parent=11 // pred_check
        %p306 = pneg %p256
      $region26: #{_gcn_batched.1} parent=11 // pred_check_branch
        %308 = sbr.rel (%p306) target = $region28
      $region27: #{_gcn_batched.1} parent=11 // pred_region
        _
      $region28: #{_gcn_batched.1} parent=11 // pred_fallthru
        _
    $region12: #{_gcn_batched.1} parent=5 // pred_fallthru
      _
    %p309 = scmp.lt.s32.totalorder %s16, 2
    // Predicated region
    $region29: #{_gcn_batched.1} parent=5 // pred_check
      %p310 = pneg %p309
    $region30: #{_gcn_batched.1} parent=5 // pred_check_branch
      %312 = sbr.rel (%p310) target = $region32
    $region31: #{_gcn_batched.1} parent=5 // pred_region
      // Predicated region
      $region33: #{_gcn_batched.1} parent=31 // pred_check
        %p313 = pneg %p36
      $region34: #{_gcn_batched.1} parent=31 // pred_check_branch
        %315 = sbr.rel (%p313) target = $region36
      $region35: #{_gcn_batched.1} parent=31 // pred_region
        %s316 = smul.u32 2, %s16
        %p317 = scmp.lt.s32.totalorder %s316, 3
        %s318 = scalar_select %p317, %s316, 3
        %s319 = smul.addr %s318, 8
        %s320 = scalar_lea.vmem %s0, %s319
        %s321 = smul.u32 2, %s16
      $region36: #{_gcn_batched.1} parent=31 // pred_fallthru
        _
      // Predicated region
      $region37: #{_gcn_batched.1} parent=31 // pred_check
        %p322 = pneg %p62
      $region38: #{_gcn_batched.1} parent=31 // pred_check_branch
        %324 = sbr.rel (%p322) target = $region40
      $region39: #{_gcn_batched.1} parent=31 // pred_region
        %s325 = smul.u32 4, %s16
        %p326 = scmp.lt.s32.totalorder %s325, 7
        %s327 = scalar_select %p326, %s325, 7
        %s328 = smul.addr %s327, 8
        %s329 = scalar_lea.vmem %s1, %s328
        %s330 = smul.u32 4, %s16
      $region40: #{_gcn_batched.1} parent=31 // pred_fallthru
        _
      // Predicated region
      $region41: #{_gcn_batched.1} parent=31 // pred_check
        %p331 = pneg %p88
      $region42: #{_gcn_batched.1} parent=31 // pred_check_branch
        %333 = sbr.rel (%p331) target = $region44
      $region43: #{_gcn_batched.1} parent=31 // pred_region
        %s334 = smul.u32 2, %s16
        %p335 = scmp.lt.s32.totalorder %s334, 3
        %s336 = scalar_select %p335, %s334, 3
        %s337 = smul.addr %s336, 2
        %s338 = smul.addr %s337, 8
        %s339 = scalar_lea.vmem %s2, %s338
        %s340 = smul.u32 2, %s16
      $region44: #{_gcn_batched.1} parent=31 // pred_fallthru
        _
      // Predicated region
      $region45: #{_gcn_batched.1} parent=31 // pred_check
        %p341 = pneg %p114
      $region46: #{_gcn_batched.1} parent=31 // pred_check_branch
        %343 = sbr.rel (%p341) target = $region48
      $region47: #{_gcn_batched.1} parent=31 // pred_region
        %s344 = smul.u32 2, %s16
        %p345 = scmp.lt.s32.totalorder %s344, 3
        %s346 = scalar_select %p345, %s344, 3
        %s347 = smul.addr %s346, 8
        %s348 = scalar_lea.vmem %s3, %s347
        %s349 = smul.u32 2, %s16
      $region48: #{_gcn_batched.1} parent=31 // pred_fallthru
        _
      // Predicated region
      $region49: #{_gcn_batched.1} parent=31 // pred_check
        %p350 = pneg %p140
      $region50: #{_gcn_batched.1} parent=31 // pred_check_branch
        %352 = sbr.rel (%p350) target = $region52
      $region51: #{_gcn_batched.1} parent=31 // pred_region
        %s353 = smul.u32 2, %s16
        %p354 = scmp.lt.s32.totalorder %s353, 3
        %s355 = scalar_select %p354, %s353, 3
        %s356 = smul.addr %s355, 8
        %s357 = scalar_lea.vmem %s4, %s356
        %s358 = smul.u32 2, %s16
      $region52: #{_gcn_batched.1} parent=31 // pred_fallthru
        _
      // Predicated region
      $region53: #{_gcn_batched.1} parent=31 // pred_check
        %p359 = pneg %p166
      $region54: #{_gcn_batched.1} parent=31 // pred_check_branch
        %361 = sbr.rel (%p359) target = $region56
      $region55: #{_gcn_batched.1} parent=31 // pred_region
        %s362 = smul.u32 2, %s16
        %p363 = scmp.lt.s32.totalorder %s362, 3
        %s364 = scalar_select %p363, %s362, 3
        %s365 = smul.addr %s364, 2
        %s366 = smul.addr %s365, 8
        %s367 = scalar_lea.vmem %s5, %s366
        %s368 = smul.u32 2, %s16
      $region56: #{_gcn_batched.1} parent=31 // pred_fallthru
        _
    $region32: #{_gcn_batched.1} parent=5 // pred_fallthru
      _
    %p369 = scmp.le.s32.totalorder 1, %s16
    %p370 = scmp.lt.s32.totalorder %s16, 3
    %p371 = pnand %p369, %p370
    %p372 = pneg %p371
    // Predicated region
    $region57: #{_gcn_batched.1} parent=5 // pred_check
      _
    $region58: #{_gcn_batched.1} parent=5 // pred_check_branch
      %374 = sbr.rel (%p371) target = $region60
    $region59: #{_gcn_batched.1} parent=5 // pred_region
      %s375 = ssub.s32 %s16, 1
      %s376 = smul.u32 2, %s21
      %p377 = scmp.lt.s32.totalorder %s376, 3
      %s378 = scalar_select %p377, %s376, 3
      %s379 = smul.addr %s378, 8
      %s380 = scalar_lea.vmem %s0, %s379
      %p381 = pneg %p42
      %p382 = pneg %p39
      %s383 = smul.u32 4, %s21
      %p384 = scmp.lt.s32.totalorder %s383, 7
      %s385 = scalar_select %p384, %s383, 7
      %s386 = smul.addr %s385, 8
      %s387 = scalar_lea.vmem %s1, %s386
      %p388 = pneg %p68
      %p389 = pneg %p65
      %s390 = smul.u32 2, %s21
      %p391 = scmp.lt.s32.totalorder %s390, 3
      %s392 = scalar_select %p391, %s390, 3
      %s393 = smul.addr %s392, 2
      %s394 = smul.addr %s393, 8
      %s395 = scalar_lea.vmem %s2, %s394
      %p396 = pneg %p94
      %p397 = pneg %p91
      %s398 = smul.u32 2, %s21
      %p399 = scmp.lt.s32.totalorder %s398, 3
      %s400 = scalar_select %p399, %s398, 3
      %s401 = smul.addr %s400, 8
      %s402 = scalar_lea.vmem %s3, %s401
      %p403 = pneg %p120
      %p404 = pneg %p117
      %s405 = smul.u32 2, %s21
      %p406 = scmp.lt.s32.totalorder %s405, 3
      %s407 = scalar_select %p406, %s405, 3
      %s408 = smul.addr %s407, 8
      %s409 = scalar_lea.vmem %s4, %s408
      %p410 = pneg %p146
      %p411 = pneg %p143
      %s412 = smul.u32 2, %s21
      %p413 = scmp.lt.s32.totalorder %s412, 3
      %s414 = scalar_select %p413, %s412, 3
      %s415 = smul.addr %s414, 2
      %s416 = smul.addr %s415, 8
      %s417 = scalar_lea.vmem %s5, %s416
      %p418 = pneg %p172
      %p419 = pneg %p169
      %p420 = pneg %p193
      %p421 = pneg %p190
      %p422 = pneg %p214
      %p423 = pneg %p211
      %p424 = pneg %p235
      %p425 = pneg %p232
      %p426 = pneg %p256
      %p427 = pneg %p253
      %p428 = pneg %p282
      %p429 = pneg %p279
      %s430 = smul.u32 2, %s21
      %p431 = scmp.lt.s32.totalorder %s430, 3
      %s432 = scalar_select %p431, %s430, 3
      %s433 = smul.addr %s432, 8
      %s434 = scalar_lea.vmem %s10, %s433
      %s435 = smul.u32 2, %s21
      %p436 = scmp.lt.s32.totalorder %s435, 3
      %s437 = scalar_select %p436, %s435, 3
      %s438 = smul.addr %s437, 8
      %s439 = scalar_lea.vmem %s0, %s438
      %s440 = smul.u32 2, %s21
      %s441 = smul.u32 4, %s21
      %p442 = scmp.lt.s32.totalorder %s441, 7
      %s443 = scalar_select %p442, %s441, 7
      %s444 = smul.addr %s443, 8
      %s445 = scalar_lea.vmem %s1, %s444
      %s446 = smul.u32 4, %s21
      %s447 = smul.u32 2, %s21
      %p448 = scmp.lt.s32.totalorder %s447, 3
      %s449 = scalar_select %p448, %s447, 3
      %s450 = smul.addr %s449, 2
      %s451 = smul.addr %s450, 8
      %s452 = scalar_lea.vmem %s2, %s451
      %s453 = smul.u32 2, %s21
      %s454 = smul.u32 2, %s21
      %p455 = scmp.lt.s32.totalorder %s454, 3
      %s456 = scalar_select %p455, %s454, 3
      %s457 = smul.addr %s456, 8
      %s458 = scalar_lea.vmem %s3, %s457
      %s459 = smul.u32 2, %s21
      %s460 = smul.u32 2, %s21
      %p461 = scmp.lt.s32.totalorder %s460, 3
      %s462 = scalar_select %p461, %s460, 3
      %s463 = smul.addr %s462, 8
      %s464 = scalar_lea.vmem %s4, %s463
      %s465 = smul.u32 2, %s21
      %s466 = smul.u32 2, %s21
      %p467 = scmp.lt.s32.totalorder %s466, 3
      %s468 = scalar_select %p467, %s466, 3
      %s469 = smul.addr %s468, 2
      %s470 = smul.addr %s469, 8
      %s471 = scalar_lea.vmem %s5, %s470
      %s472 = smul.u32 2, %s21
      %s473 = smul.u32 2, %s21
      %p474 = scmp.lt.s32.totalorder %s473, 3
      %s475 = scalar_select %p474, %s473, 3
      %s476 = smul.addr %s475, 8
      %s477 = scalar_lea.vmem %s10, %s476
      %s478 = smul.u32 2, %s21
      %v479 = vld [vmem:[%s9] sm:$0xff]
      %v480 = vld [vmem:[%s9 + $0x8] sm:$0xff]
      %v481 = vld [vmem:[%s9 + $0x10] sm:$0xff]
      %v482 = vld [vmem:[%s9 + $0x18] sm:$0xff]
      %vm483 = vcmp.gt.f32.partialorder %v480, 0.5
      %vm484 = vcmp.gt.f32.partialorder %v481, 0.5
      %vm485 = vcmp.gt.f32.partialorder %v482, 0.5
      %v486 = vld [vmem:[%s439] sm:$0xff]
      %v487 = vld [vmem:[%s439 + $0x8] sm:$0xff]
      %v488 = vld [vmem:[%s6] sm:$0xff]
      %v489 = vld [vmem:[%s6 + $0x8] sm:$0xff]
      %vm490 = vcmask 130048
      %v492 = vsel %vm490, %v486, 0
      %v495 = vsel %vm490, %v487, 0
      %497 = vmatprep.subr.mxu0 0.0
      %498 = vmatpush1.msra.mxu0 %v488
      %499 = vmatprep.subr.mxu0 0.0
      %500 = vmatpush1.msra.mxu0 %v489
      %501 = vmatprep.subr.mxu0 0.0
      %502 = vmatpush1.msra.mxu0 0.0
      %503 = vmatprep.subr.mxu0 0.0
      %504 = vmatpush1.msra.mxu0 0.0
      %505 = vmatprep.subr.mxu0 0.0
      %506 = vmatpush1.msra.mxu0 0.0
      %507 = vmatprep.subr.mxu0 0.0
      %508 = vmatpush1.msra.mxu0 0.0
      %509 = vmatprep.subr.mxu0 0.0
      %510 = vmatpush1.msra.mxu0 0.0
      %511 = vmatprep.subr.mxu0 0.0
      %512 = vmatpush1.msra.mxu0 0.0
      %513 = vmatprep.subr.mxu0 0.0
      %514 = vmatpush1.msra.mxu0 0.0
      %515 = vmatprep.subr.mxu0 0.0
      %516 = vmatpush1.msra.mxu0 0.0
      %517 = vmatprep.subr.mxu0 0.0
      %518 = vmatpush1.msra.mxu0 0.0
      %519 = vmatprep.subr.mxu0 0.0
      %520 = vmatpush1.msra.mxu0 0.0
      %521 = vmatprep.subr.mxu0 0.0
      %522 = vmatpush1.msra.mxu0 0.0
      %523 = vmatprep.subr.mxu0 0.0
      %524 = vmatpush1.msra.mxu0 0.0
      %525 = vmatprep.subr.mxu0 0.0
      %526 = vmatpush1.msra.mxu0 0.0
      %527 = vmatprep.subr.mxu0 0.0
      %528 = vmatpush1.msra.mxu0 0.0
      %529 = vmatprep.subr.mxu0 0.0
      %530 = vmatpush1.msra.mxu0 0.0
      %531 = vmatprep.subr.mxu0 0.0
      %532 = vmatpush1.msra.mxu0 0.0
      %533 = vmatprep.subr.mxu0 0.0
      %534 = vmatpush1.msra.mxu0 0.0
      %535 = vmatprep.subr.mxu0 0.0
      %536 = vmatpush1.msra.mxu0 0.0
      %537 = vmatprep.subr.mxu0 0.0
      %538 = vmatpush1.msra.mxu0 0.0
      %539 = vmatprep.subr.mxu0 0.0
      %540 = vmatpush1.msra.mxu0 0.0
      %541 = vmatprep.subr.mxu0 0.0
      %542 = vmatpush1.msra.mxu0 0.0
      %543 = vmatprep.subr.mxu0 0.0
      %544 = vmatpush1.msra.mxu0 0.0
      %545 = vmatprep.subr.mxu0 0.0
      %546 = vmatpush1.msra.mxu0 0.0
      %547 = vmatprep.subr.mxu0 0.0
      %548 = vmatpush1.msra.mxu0 0.0
      %549 = vmatprep.subr.mxu0 0.0
      %550 = vmatpush1.msra.mxu0 0.0
      %551 = vmatprep.subr.mxu0 0.0
      %552 = vmatpush1.msra.mxu0 0.0
      %553 = vmatprep.subr.mxu0 0.0
      %554 = vmatpush1.msra.mxu0 0.0
      %555 = vmatprep.subr.mxu0 0.0
      %556 = vmatpush1.msra.mxu0 0.0
      %557 = vmatprep.subr.mxu0 0.0
      %558 = vmatpush1.msra.mxu0 0.0
      %559 = vmatprep.subr.mxu0 0.0
      %560 = vmatpush1.msra.mxu0 0.0
      %561 = vmatprep.mubr.f32.mxu0 0.0
      %562 = vmatmul.mubr.f32.gmra.mrb[0].mxu0 %v492
      %v563 = vpop.f32.mrb[0].mxu0
      %v564 = vadd.f32 0.0, %v563
      %v565 = vpop.f32.mrb[0].mxu0
      %566 = vmatprep.mubr.f32.mxu0 0.0
      %567 = vmatmul.mubr.f32.gmra.mrb[0].mxu0 %v495
      %v568 = vpop.f32.mrb[0].mxu0
      %v569 = vadd.f32 0.0, %v568
      %v570 = vpop.f32.mrb[0].mxu0
      %571 = vdwg.mxu0
      %v572 = vld [vmem:[%s445] sm:$0xff]
      %v573 = vld [vmem:[%s445 + $0x8] sm:$0xff]
      %v574 = vld [vmem:[%s464] sm:$0xff]
      %v575 = vld [vmem:[%s471] sm:$0xff]
      %v576 = vld [vmem:[%s471 + $0x8] sm:$0xff]
      %v577 = vlaneseq
      %v578 = vshrl.u32 %v577, 7
      %v579 = vsub.s32 0, %v578
      %v580 = vrot.slane %v479, %v579
      %v581 = vmul.f32 %v572, %v580
      %v582 = vmul.f32 %v573, %v580
      %vm583 = vcmask 64512
      %v584 = vsel %vm583, %v581, 0.0
      %585 = vadd.xlane.f32.xlu0 %v584
      %v586 = vpop.xlane.xlu0 %585
      %v587 = vsel %vm583, %v582, 0.0
      %588 = vadd.xlane.f32.xlu0 %v587
      %v589 = vpop.xlane.xlu0 %588
      %v590 = vmul.f32 %v586, %v575
      %v591 = vmul.f32 %v589, %v576
      %v593 = vsel %vm490, %v574, 0
      %595 = vmatprep.subr.mxu0 0.0
      %596 = vmatpush1.msra.mxu0 %v590
      %597 = vmatprep.subr.mxu0 0.0
      %598 = vmatpush1.msra.mxu0 %v591
      %599 = vmatprep.subr.mxu0 0.0
      %600 = vmatpush1.msra.mxu0 0.0
      %601 = vmatprep.subr.mxu0 0.0
      %602 = vmatpush1.msra.mxu0 0.0
      %603 = vmatprep.subr.mxu0 0.0
      %604 = vmatpush1.msra.mxu0 0.0
      %605 = vmatprep.subr.mxu0 0.0
      %606 = vmatpush1.msra.mxu0 0.0
      %607 = vmatprep.subr.mxu0 0.0
      %608 = vmatpush1.msra.mxu0 0.0
      %609 = vmatprep.subr.mxu0 0.0
      %610 = vmatpush1.msra.mxu0 0.0
      %611 = vmatprep.subr.mxu0 0.0
      %612 = vmatpush1.msra.mxu0 0.0
      %613 = vmatprep.subr.mxu0 0.0
      %614 = vmatpush1.msra.mxu0 0.0
      %615 = vmatprep.subr.mxu0 0.0
      %616 = vmatpush1.msra.mxu0 0.0
      %617 = vmatprep.subr.mxu0 0.0
      %618 = vmatpush1.msra.mxu0 0.0
      %619 = vmatprep.subr.mxu0 0.0
      %620 = vmatpush1.msra.mxu0 0.0
      %621 = vmatprep.subr.mxu0 0.0
      %622 = vmatpush1.msra.mxu0 0.0
      %623 = vmatprep.subr.mxu0 0.0
      %624 = vmatpush1.msra.mxu0 0.0
      %625 = vmatprep.subr.mxu0 0.0
      %626 = vmatpush1.msra.mxu0 0.0
      %627 = vmatprep.subr.mxu0 0.0
      %628 = vmatpush1.msra.mxu0 0.0
      %629 = vmatprep.subr.mxu0 0.0
      %630 = vmatpush1.msra.mxu0 0.0
      %631 = vmatprep.subr.mxu0 0.0
      %632 = vmatpush1.msra.mxu0 0.0
      %633 = vmatprep.subr.mxu0 0.0
      %634 = vmatpush1.msra.mxu0 0.0
      %635 = vmatprep.subr.mxu0 0.0
      %636 = vmatpush1.msra.mxu0 0.0
      %637 = vmatprep.subr.mxu0 0.0
      %638 = vmatpush1.msra.mxu0 0.0
      %639 = vmatprep.subr.mxu0 0.0
      %640 = vmatpush1.msra.mxu0 0.0
      %641 = vmatprep.subr.mxu0 0.0
      %642 = vmatpush1.msra.mxu0 0.0
      %643 = vmatprep.subr.mxu0 0.0
      %644 = vmatpush1.msra.mxu0 0.0
      %645 = vmatprep.subr.mxu0 0.0
      %646 = vmatpush1.msra.mxu0 0.0
      %647 = vmatprep.subr.mxu0 0.0
      %648 = vmatpush1.msra.mxu0 0.0
      %649 = vmatprep.subr.mxu0 0.0
      %650 = vmatpush1.msra.mxu0 0.0
      %651 = vmatprep.subr.mxu0 0.0
      %652 = vmatpush1.msra.mxu0 0.0
      %653 = vmatprep.subr.mxu0 0.0
      %654 = vmatpush1.msra.mxu0 0.0
      %655 = vmatprep.subr.mxu0 0.0
      %656 = vmatpush1.msra.mxu0 0.0
      %657 = vmatprep.subr.mxu0 0.0
      %658 = vmatpush1.msra.mxu0 0.0
      %659 = vmatprep.mubr.f32.mxu0 0.0
      %660 = vmatmul.mubr.f32.gmra.mrb[0].mxu0 %v593
      %v661 = vpop.f32.mrb[0].mxu0
      %v662 = vadd.f32 0.0, %v661
      %v663 = vpop.f32.mrb[0].mxu0
      %664 = vdwg.mxu0
      %v665 = vsel %vm485, 1.0, %v662
      %v666 = vld [vmem:[%s458] sm:$0xff]
      %v667 = vmul.f32 %v665, %v666
      %v668 = vlaneseq
      %v669 = vshrl.u32 %v668, 7
      %v670 = vsub.s32 1, %v669
      %v671 = vrot.slane %v479, %v670
      %v673 = vsel %vm583, %v667, 0
      %675 = vmatprep.subr.mxu0 0.0
      %676 = vmatpush1.msra.mxu0 %v564
      %677 = vmatprep.subr.mxu0 0.0
      %678 = vmatpush1.msra.mxu0 0.0
      %679 = vmatprep.subr.mxu0 0.0
      %680 = vmatpush1.msra.mxu0 0.0
      %681 = vmatprep.subr.mxu0 0.0
      %682 = vmatpush1.msra.mxu0 0.0
      %683 = vmatprep.subr.mxu0 0.0
      %684 = vmatpush1.msra.mxu0 0.0
      %685 = vmatprep.subr.mxu0 0.0
      %686 = vmatpush1.msra.mxu0 0.0
      %687 = vmatprep.subr.mxu0 0.0
      %688 = vmatpush1.msra.mxu0 0.0
      %689 = vmatprep.subr.mxu0 0.0
      %690 = vmatpush1.msra.mxu0 0.0
      %691 = vmatprep.subr.mxu0 0.0
      %692 = vmatpush1.msra.mxu0 0.0
      %693 = vmatprep.subr.mxu0 0.0
      %694 = vmatpush1.msra.mxu0 0.0
      %695 = vmatprep.subr.mxu0 0.0
      %696 = vmatpush1.msra.mxu0 0.0
      %697 = vmatprep.subr.mxu0 0.0
      %698 = vmatpush1.msra.mxu0 0.0
      %699 = vmatprep.subr.mxu0 0.0
      %700 = vmatpush1.msra.mxu0 0.0
      %701 = vmatprep.subr.mxu0 0.0
      %702 = vmatpush1.msra.mxu0 0.0
      %703 = vmatprep.subr.mxu0 0.0
      %704 = vmatpush1.msra.mxu0 0.0
      %705 = vmatprep.subr.mxu0 0.0
      %706 = vmatpush1.msra.mxu0 0.0
      %707 = vmatprep.subr.mxu0 0.0
      %708 = vmatpush1.msra.mxu0 0.0
      %709 = vmatprep.subr.mxu0 0.0
      %710 = vmatpush1.msra.mxu0 0.0
      %711 = vmatprep.subr.mxu0 0.0
      %712 = vmatpush1.msra.mxu0 0.0
      %713 = vmatprep.subr.mxu0 0.0
      %714 = vmatpush1.msra.mxu0 0.0
      %715 = vmatprep.subr.mxu0 0.0
      %716 = vmatpush1.msra.mxu0 0.0
      %717 = vmatprep.subr.mxu0 0.0
      %718 = vmatpush1.msra.mxu0 0.0
      %719 = vmatprep.subr.mxu0 0.0
      %720 = vmatpush1.msra.mxu0 0.0
      %721 = vmatprep.subr.mxu0 0.0
      %722 = vmatpush1.msra.mxu0 0.0
      %723 = vmatprep.subr.mxu0 0.0
      %724 = vmatpush1.msra.mxu0 0.0
      %725 = vmatprep.subr.mxu0 0.0
      %726 = vmatpush1.msra.mxu0 0.0
      %727 = vmatprep.subr.mxu0 0.0
      %728 = vmatpush1.msra.mxu0 0.0
      %729 = vmatprep.subr.mxu0 0.0
      %730 = vmatpush1.msra.mxu0 0.0
      %731 = vmatprep.subr.mxu0 0.0
      %732 = vmatpush1.msra.mxu0 0.0
      %733 = vmatprep.subr.mxu0 0.0
      %734 = vmatpush1.msra.mxu0 0.0
      %735 = vmatprep.subr.mxu0 0.0
      %736 = vmatpush1.msra.mxu0 0.0
      %737 = vmatprep.subr.mxu0 0.0
      %738 = vmatpush1.msra.mxu0 0.0
      %739 = vmatprep.mubr.f32.mxu0 0.0
      %740 = vmatmul.mubr.f32.gmra.mrb[0].mxu0 %v673
      %v741 = vpop.f32.mrb[0].mxu0
      %v742 = vadd.f32 %v671, %v741
      %v743 = vpop.f32.mrb[0].mxu0
      %744 = vdwg.mxu0
      %v745 = vmax.f32 %v742, 0.0
      %vm746 = vcmask 261120
      %747 = vst.msk [vmem:[#allocation2] sm:$0xff] %vm746, %v745
      %v748 = vld [vmem:[%s445 + $0x10] sm:$0xff]
      %v749 = vld [vmem:[%s445 + $0x18] sm:$0xff]
      %s750 = scalar_lea.vmem %s464, 8
      %v751 = vld [vmem:[%s750] sm:$0xff]
      %s752 = scalar_lea.vmem %s471, 16
      %v753 = vld [vmem:[%s752] sm:$0xff]
      %v754 = vld [vmem:[%s752 + $0x8] sm:$0xff]
      %v755 = vmul.f32 %v748, %v580
      %v756 = vmul.f32 %v749, %v580
      %v757 = vsel %vm583, %v755, 0.0
      %758 = vadd.xlane.f32.xlu0 %v757
      %v759 = vpop.xlane.xlu0 %758
      %v760 = vsel %vm583, %v756, 0.0
      %761 = vadd.xlane.f32.xlu0 %v760
      %v762 = vpop.xlane.xlu0 %761
      %v763 = vmul.f32 %v759, %v753
      %v764 = vmul.f32 %v762, %v754
      %v766 = vsel %vm490, %v751, 0
      %768 = vmatprep.subr.mxu0 0.0
      %769 = vmatpush1.msra.mxu0 %v763
      %770 = vmatprep.subr.mxu0 0.0
      %771 = vmatpush1.msra.mxu0 %v764
      %772 = vmatprep.subr.mxu0 0.0
      %773 = vmatpush1.msra.mxu0 0.0
      %774 = vmatprep.subr.mxu0 0.0
      %775 = vmatpush1.msra.mxu0 0.0
      %776 = vmatprep.subr.mxu0 0.0
      %777 = vmatpush1.msra.mxu0 0.0
      %778 = vmatprep.subr.mxu0 0.0
      %779 = vmatpush1.msra.mxu0 0.0
      %780 = vmatprep.subr.mxu0 0.0
      %781 = vmatpush1.msra.mxu0 0.0
      %782 = vmatprep.subr.mxu0 0.0
      %783 = vmatpush1.msra.mxu0 0.0
      %784 = vmatprep.subr.mxu0 0.0
      %785 = vmatpush1.msra.mxu0 0.0
      %786 = vmatprep.subr.mxu0 0.0
      %787 = vmatpush1.msra.mxu0 0.0
      %788 = vmatprep.subr.mxu0 0.0
      %789 = vmatpush1.msra.mxu0 0.0
      %790 = vmatprep.subr.mxu0 0.0
      %791 = vmatpush1.msra.mxu0 0.0
      %792 = vmatprep.subr.mxu0 0.0
      %793 = vmatpush1.msra.mxu0 0.0
      %794 = vmatprep.subr.mxu0 0.0
      %795 = vmatpush1.msra.mxu0 0.0
      %796 = vmatprep.subr.mxu0 0.0
      %797 = vmatpush1.msra.mxu0 0.0
      %798 = vmatprep.subr.mxu0 0.0
      %799 = vmatpush1.msra.mxu0 0.0
      %800 = vmatprep.subr.mxu0 0.0
      %801 = vmatpush1.msra.mxu0 0.0
      %802 = vmatprep.subr.mxu0 0.0
      %803 = vmatpush1.msra.mxu0 0.0
      %804 = vmatprep.subr.mxu0 0.0
      %805 = vmatpush1.msra.mxu0 0.0
      %806 = vmatprep.subr.mxu0 0.0
      %807 = vmatpush1.msra.mxu0 0.0
      %808 = vmatprep.subr.mxu0 0.0
      %809 = vmatpush1.msra.mxu0 0.0
      %810 = vmatprep.subr.mxu0 0.0
      %811 = vmatpush1.msra.mxu0 0.0
      %812 = vmatprep.subr.mxu0 0.0
      %813 = vmatpush1.msra.mxu0 0.0
      %814 = vmatprep.subr.mxu0 0.0
      %815 = vmatpush1.msra.mxu0 0.0
      %816 = vmatprep.subr.mxu0 0.0
      %817 = vmatpush1.msra.mxu0 0.0
      %818 = vmatprep.subr.mxu0 0.0
      %819 = vmatpush1.msra.mxu0 0.0
      %820 = vmatprep.subr.mxu0 0.0
      %821 = vmatpush1.msra.mxu0 0.0
      %822 = vmatprep.subr.mxu0 0.0
      %823 = vmatpush1.msra.mxu0 0.0
      %824 = vmatprep.subr.mxu0 0.0
      %825 = vmatpush1.msra.mxu0 0.0
      %826 = vmatprep.subr.mxu0 0.0
      %827 = vmatpush1.msra.mxu0 0.0
      %828 = vmatprep.subr.mxu0 0.0
      %829 = vmatpush1.msra.mxu0 0.0
      %830 = vmatprep.subr.mxu0 0.0
      %831 = vmatpush1.msra.mxu0 0.0
      %832 = vmatprep.mubr.f32.mxu0 0.0
      %833 = vmatmul.mubr.f32.gmra.mrb[0].mxu0 %v766
      %v834 = vpop.f32.mrb[0].mxu0
      %v835 = vadd.f32 0.0, %v834
      %v836 = vpop.f32.mrb[0].mxu0
      %837 = vdwg.mxu0
      %v838 = vsel %vm485, 1.0, %v835
      %s839 = scalar_lea.vmem %s458, 8
      %v840 = vld [vmem:[%s839] sm:$0xff]
      %v841 = vmul.f32 %v838, %v840
      %v843 = vsel %vm583, %v841, 0
      %845 = vmatprep.subr.mxu0 0.0
      %846 = vmatpush1.msra.mxu0 %v569
      %847 = vmatprep.subr.mxu0 0.0
      %848 = vmatpush1.msra.mxu0 0.0
      %849 = vmatprep.subr.mxu0 0.0
      %850 = vmatpush1.msra.mxu0 0.0
      %851 = vmatprep.subr.mxu0 0.0
      %852 = vmatpush1.msra.mxu0 0.0
      %853 = vmatprep.subr.mxu0 0.0
      %854 = vmatpush1.msra.mxu0 0.0
      %855 = vmatprep.subr.mxu0 0.0
      %856 = vmatpush1.msra.mxu0 0.0
      %857 = vmatprep.subr.mxu0 0.0
      %858 = vmatpush1.msra.mxu0 0.0
      %859 = vmatprep.subr.mxu0 0.0
      %860 = vmatpush1.msra.mxu0 0.0
      %861 = vmatprep.subr.mxu0 0.0
      %862 = vmatpush1.msra.mxu0 0.0
      %863 = vmatprep.subr.mxu0 0.0
      %864 = vmatpush1.msra.mxu0 0.0
      %865 = vmatprep.subr.mxu0 0.0
      %866 = vmatpush1.msra.mxu0 0.0
      %867 = vmatprep.subr.mxu0 0.0
      %868 = vmatpush1.msra.mxu0 0.0
      %869 = vmatprep.subr.mxu0 0.0
      %870 = vmatpush1.msra.mxu0 0.0
      %871 = vmatprep.subr.mxu0 0.0
      %872 = vmatpush1.msra.mxu0 0.0
      %873 = vmatprep.subr.mxu0 0.0
      %874 = vmatpush1.msra.mxu0 0.0
      %875 = vmatprep.subr.mxu0 0.0
      %876 = vmatpush1.msra.mxu0 0.0
      %877 = vmatprep.subr.mxu0 0.0
      %878 = vmatpush1.msra.mxu0 0.0
      %879 = vmatprep.subr.mxu0 0.0
      %880 = vmatpush1.msra.mxu0 0.0
      %881 = vmatprep.subr.mxu0 0.0
      %882 = vmatpush1.msra.mxu0 0.0
      %883 = vmatprep.subr.mxu0 0.0
      %884 = vmatpush1.msra.mxu0 0.0
      %885 = vmatprep.subr.mxu0 0.0
      %886 = vmatpush1.msra.mxu0 0.0
      %887 = vmatprep.subr.mxu0 0.0
      %888 = vmatpush1.msra.mxu0 0.0
      %889 = vmatprep.subr.mxu0 0.0
      %890 = vmatpush1.msra.mxu0 0.0
      %891 = vmatprep.subr.mxu0 0.0
      %892 = vmatpush1.msra.mxu0 0.0
      %893 = vmatprep.subr.mxu0 0.0
      %894 = vmatpush1.msra.mxu0 0.0
      %895 = vmatprep.subr.mxu0 0.0
      %896 = vmatpush1.msra.mxu0 0.0
      %897 = vmatprep.subr.mxu0 0.0
      %898 = vmatpush1.msra.mxu0 0.0
      %899 = vmatprep.subr.mxu0 0.0
      %900 = vmatpush1.msra.mxu0 0.0
      %901 = vmatprep.subr.mxu0 0.0
      %902 = vmatpush1.msra.mxu0 0.0
      %903 = vmatprep.subr.mxu0 0.0
      %904 = vmatpush1.msra.mxu0 0.0
      %905 = vmatprep.subr.mxu0 0.0
      %906 = vmatpush1.msra.mxu0 0.0
      %907 = vmatprep.subr.mxu0 0.0
      %908 = vmatpush1.msra.mxu0 0.0
      %909 = vmatprep.mubr.f32.mxu0 0.0
      %910 = vmatmul.mubr.f32.gmra.mrb[0].mxu0 %v843
      %v911 = vpop.f32.mrb[0].mxu0
      %v912 = vadd.f32 %v671, %v911
      %v913 = vpop.f32.mrb[0].mxu0
      %914 = vdwg.mxu0
      %v915 = vmax.f32 %v912, 0.0
      %916 = vst.msk [vmem:[#allocation2 + $0x8] sm:$0xff] %vm746, %v915
      %v917 = vld [vmem:[%s445] sm:$0xff]
      %v918 = vld [vmem:[%s445 + $0x8] sm:$0xff]
      %v919 = vld [vmem:[%s445 + $0x10] sm:$0xff]
      %v920 = vld [vmem:[%s445 + $0x18] sm:$0xff]
      %v921 = vmax.f32 %v917, 0.0
      %v922 = vmax.f32 %v918, 0.0
      %v923 = vmax.f32 %v919, 0.0
      %v924 = vmax.f32 %v920, 0.0
      %v925 = vld [vmem:[%s7] sm:$0xff]
      %v927 = vsel %vm583, %v921, 0
      %v930 = vsel %vm583, %v922, 0
      %v933 = vsel %vm583, %v923, 0
      %v936 = vsel %vm583, %v924, 0
      %938 = vmatprep.subr.mxu0 0.0
      %939 = vmatpush1.msra.mxu0 %v925
      %940 = vmatprep.subr.mxu0 0.0
      %941 = vmatpush1.msra.mxu0 0.0
      %942 = vmatprep.subr.mxu0 0.0
      %943 = vmatpush1.msra.mxu0 0.0
      %944 = vmatprep.subr.mxu0 0.0
      %945 = vmatpush1.msra.mxu0 0.0
      %946 = vmatprep.subr.mxu0 0.0
      %947 = vmatpush1.msra.mxu0 0.0
      %948 = vmatprep.subr.mxu0 0.0
      %949 = vmatpush1.msra.mxu0 0.0
      %950 = vmatprep.subr.mxu0 0.0
      %951 = vmatpush1.msra.mxu0 0.0
      %952 = vmatprep.subr.mxu0 0.0
      %953 = vmatpush1.msra.mxu0 0.0
      %954 = vmatprep.subr.mxu0 0.0
      %955 = vmatpush1.msra.mxu0 0.0
      %956 = vmatprep.subr.mxu0 0.0
      %957 = vmatpush1.msra.mxu0 0.0
      %958 = vmatprep.subr.mxu0 0.0
      %959 = vmatpush1.msra.mxu0 0.0
      %960 = vmatprep.subr.mxu0 0.0
      %961 = vmatpush1.msra.mxu0 0.0
      %962 = vmatprep.subr.mxu0 0.0
      %963 = vmatpush1.msra.mxu0 0.0
      %964 = vmatprep.subr.mxu0 0.0
      %965 = vmatpush1.msra.mxu0 0.0
      %966 = vmatprep.subr.mxu0 0.0
      %967 = vmatpush1.msra.mxu0 0.0
      %968 = vmatprep.subr.mxu0 0.0
      %969 = vmatpush1.msra.mxu0 0.0
      %970 = vmatprep.subr.mxu0 0.0
      %971 = vmatpush1.msra.mxu0 0.0
      %972 = vmatprep.subr.mxu0 0.0
      %973 = vmatpush1.msra.mxu0 0.0
      %974 = vmatprep.subr.mxu0 0.0
      %975 = vmatpush1.msra.mxu0 0.0
      %976 = vmatprep.subr.mxu0 0.0
      %977 = vmatpush1.msra.mxu0 0.0
      %978 = vmatprep.subr.mxu0 0.0
      %979 = vmatpush1.msra.mxu0 0.0
      %980 = vmatprep.subr.mxu0 0.0
      %981 = vmatpush1.msra.mxu0 0.0
      %982 = vmatprep.subr.mxu0 0.0
      %983 = vmatpush1.msra.mxu0 0.0
      %984 = vmatprep.subr.mxu0 0.0
      %985 = vmatpush1.msra.mxu0 0.0
      %986 = vmatprep.subr.mxu0 0.0
      %987 = vmatpush1.msra.mxu0 0.0
      %988 = vmatprep.subr.mxu0 0.0
      %989 = vmatpush1.msra.mxu0 0.0
      %990 = vmatprep.subr.mxu0 0.0
      %991 = vmatpush1.msra.mxu0 0.0
      %992 = vmatprep.subr.mxu0 0.0
      %993 = vmatpush1.msra.mxu0 0.0
      %994 = vmatprep.subr.mxu0 0.0
      %995 = vmatpush1.msra.mxu0 0.0
      %996 = vmatprep.subr.mxu0 0.0
      %997 = vmatpush1.msra.mxu0 0.0
      %998 = vmatprep.subr.mxu0 0.0
      %999 = vmatpush1.msra.mxu0 0.0
      %1000 = vmatprep.subr.mxu0 0.0
      %1001 = vmatpush1.msra.mxu0 0.0
      %1002 = vmatprep.mubr.f32.mxu0 0.0
      %1003 = vmatmul.mubr.f32.gmra.mrb[0].mxu0 %v927
      %v1004 = vpop.f32.mrb[0].mxu0
      %v1005 = vadd.f32 0.0, %v1004
      %v1006 = vpop.f32.mrb[0].mxu0
      %1007 = vmatprep.mubr.f32.mxu0 0.0
      %1008 = vmatmul.mubr.f32.gmra.mrb[0].mxu0 %v930
      %v1009 = vpop.f32.mrb[0].mxu0
      %v1010 = vadd.f32 0.0, %v1009
      %v1011 = vpop.f32.mrb[0].mxu0
      %1012 = vmatprep.mubr.f32.mxu0 0.0
      %1013 = vmatmul.mubr.f32.gmra.mrb[0].mxu0 %v933
      %v1014 = vpop.f32.mrb[0].mxu0
      %v1015 = vadd.f32 0.0, %v1014
      %v1016 = vpop.f32.mrb[0].mxu0
      %1017 = vmatprep.mubr.f32.mxu0 0.0
      %1018 = vmatmul.mubr.f32.gmra.mrb[0].mxu0 %v936
      %v1019 = vpop.f32.mrb[0].mxu0
      %v1020 = vadd.f32 0.0, %v1019
      %v1021 = vpop.f32.mrb[0].mxu0
      %1022 = vdwg.mxu0
      %v1023 = vld [vmem:[#allocation2] sm:$0xff]
      %v1024 = vld [vmem:[#allocation2 + $0x8] sm:$0xff]
      %v1025 = vld [vmem:[%s8] sm:$0xff]
      %v1026 = vld [vmem:[%s8 + $0x8] sm:$0xff]
      %v1027 = vld [vmem:[%s8 + $0x10] sm:$0xff]
      %v1028 = vld [vmem:[%s8 + $0x18] sm:$0xff]
      %v1030 = vsel %vm746, %v1023, 0
      %v1033 = vsel %vm746, %v1024, 0
      %1035 = vmatprep.subr.mxu0 0.0
      %1036 = vmatpush1.msra.mxu0 %v1025
      %1037 = vmatprep.subr.mxu0 0.0
      %1038 = vmatpush1.msra.mxu0 %v1026
      %1039 = vmatprep.subr.mxu0 0.0
      %1040 = vmatpush1.msra.mxu0 %v1027
      %1041 = vmatprep.subr.mxu0 0.0
      %1042 = vmatpush1.msra.mxu0 %v1028
      %1043 = vmatprep.subr.mxu0 0.0
      %1044 = vmatpush1.msra.mxu0 0.0
      %1045 = vmatprep.subr.mxu0 0.0
      %1046 = vmatpush1.msra.mxu0 0.0
      %1047 = vmatprep.subr.mxu0 0.0
      %1048 = vmatpush1.msra.mxu0 0.0
      %1049 = vmatprep.subr.mxu0 0.0
      %1050 = vmatpush1.msra.mxu0 0.0
      %1051 = vmatprep.subr.mxu0 0.0
      %1052 = vmatpush1.msra.mxu0 0.0
      %1053 = vmatprep.subr.mxu0 0.0
      %1054 = vmatpush1.msra.mxu0 0.0
      %1055 = vmatprep.subr.mxu0 0.0
      %1056 = vmatpush1.msra.mxu0 0.0
      %1057 = vmatprep.subr.mxu0 0.0
      %1058 = vmatpush1.msra.mxu0 0.0
      %1059 = vmatprep.subr.mxu0 0.0
      %1060 = vmatpush1.msra.mxu0 0.0
      %1061 = vmatprep.subr.mxu0 0.0
      %1062 = vmatpush1.msra.mxu0 0.0
      %1063 = vmatprep.subr.mxu0 0.0
      %1064 = vmatpush1.msra.mxu0 0.0
      %1065 = vmatprep.subr.mxu0 0.0
      %1066 = vmatpush1.msra.mxu0 0.0
      %1067 = vmatprep.subr.mxu0 0.0
      %1068 = vmatpush1.msra.mxu0 0.0
      %1069 = vmatprep.subr.mxu0 0.0
      %1070 = vmatpush1.msra.mxu0 0.0
      %1071 = vmatprep.subr.mxu0 0.0
      %1072 = vmatpush1.msra.mxu0 0.0
      %1073 = vmatprep.subr.mxu0 0.0
      %1074 = vmatpush1.msra.mxu0 0.0
      %1075 = vmatprep.subr.mxu0 0.0
      %1076 = vmatpush1.msra.mxu0 0.0
      %1077 = vmatprep.subr.mxu0 0.0
      %1078 = vmatpush1.msra.mxu0 0.0
      %1079 = vmatprep.subr.mxu0 0.0
      %1080 = vmatpush1.msra.mxu0 0.0
      %1081 = vmatprep.subr.mxu0 0.0
      %1082 = vmatpush1.msra.mxu0 0.0
      %1083 = vmatprep.subr.mxu0 0.0
      %1084 = vmatpush1.msra.mxu0 0.0
      %1085 = vmatprep.subr.mxu0 0.0
      %1086 = vmatpush1.msra.mxu0 0.0
      %1087 = vmatprep.subr.mxu0 0.0
      %1088 = vmatpush1.msra.mxu0 0.0
      %1089 = vmatprep.subr.mxu0 0.0
      %1090 = vmatpush1.msra.mxu0 0.0
      %1091 = vmatprep.subr.mxu0 0.0
      %1092 = vmatpush1.msra.mxu0 0.0
      %1093 = vmatprep.subr.mxu0 0.0
      %1094 = vmatpush1.msra.mxu0 0.0
      %1095 = vmatprep.subr.mxu0 0.0
      %1096 = vmatpush1.msra.mxu0 0.0
      %1097 = vmatprep.subr.mxu0 0.0
      %1098 = vmatpush1.msra.mxu0 0.0
      %1099 = vmatprep.mubr.f32.mxu0 0.0
      %1100 = vmatmul.mubr.f32.gmra.mrb[0].mxu0 %v1030
      %v1101 = vpop.f32.mrb[0].mxu0
      %v1102 = vadd.f32 0.0, %v1101
      %v1103 = vpop.f32.mrb[0].mxu0
      %1104 = vmatprep.mubr.f32.mxu0 0.0
      %1105 = vmatmul.mubr.f32.gmra.mrb[0].mxu0 %v1033
      %v1106 = vpop.f32.mrb[0].mxu0
      %v1107 = vadd.f32 0.0, %v1106
      %v1108 = vpop.f32.mrb[0].mxu0
      %1109 = vdwg.mxu0
      %v1110 = vld [vmem:[%s464] sm:$0xff]
      %v1111 = vld [vmem:[%s471] sm:$0xff]
      %v1112 = vld [vmem:[%s471 + $0x8] sm:$0xff]
      %v1113 = vlaneseq
      %v1114 = vshrl.u32 %v1113, 7
      %v1115 = vsub.s32 2, %v1114
      %v1116 = vrot.slane %v479, %v1115
      %v1117 = vmul.f32 %v1023, %v1116
      %v1118 = vsel %vm746, %v1117, 0.0
      %1119 = vadd.xlane.f32.xlu0 %v1118
      %v1120 = vpop.xlane.xlu0 %1119
      %v1121 = vmul.f32 %v1120, %v1110
      %v1123 = vsel %vm583, %v1111, 0
      %v1126 = vsel %vm583, %v1112, 0
      %1128 = vmatprep.subr.mxu0 0.0
      %1129 = vmatpush1.msra.mxu0 %v1121
      %1130 = vmatprep.subr.mxu0 0.0
      %1131 = vmatpush1.msra.mxu0 0.0
      %1132 = vmatprep.subr.mxu0 0.0
      %1133 = vmatpush1.msra.mxu0 0.0
      %1134 = vmatprep.subr.mxu0 0.0
      %1135 = vmatpush1.msra.mxu0 0.0
      %1136 = vmatprep.subr.mxu0 0.0
      %1137 = vmatpush1.msra.mxu0 0.0
      %1138 = vmatprep.subr.mxu0 0.0
      %1139 = vmatpush1.msra.mxu0 0.0
      %1140 = vmatprep.subr.mxu0 0.0
      %1141 = vmatpush1.msra.mxu0 0.0
      %1142 = vmatprep.subr.mxu0 0.0
      %1143 = vmatpush1.msra.mxu0 0.0
      %1144 = vmatprep.subr.mxu0 0.0
      %1145 = vmatpush1.msra.mxu0 0.0
      %1146 = vmatprep.subr.mxu0 0.0
      %1147 = vmatpush1.msra.mxu0 0.0
      %1148 = vmatprep.subr.mxu0 0.0
      %1149 = vmatpush1.msra.mxu0 0.0
      %1150 = vmatprep.subr.mxu0 0.0
      %1151 = vmatpush1.msra.mxu0 0.0
      %1152 = vmatprep.subr.mxu0 0.0
      %1153 = vmatpush1.msra.mxu0 0.0
      %1154 = vmatprep.subr.mxu0 0.0
      %1155 = vmatpush1.msra.mxu0 0.0
      %1156 = vmatprep.subr.mxu0 0.0
      %1157 = vmatpush1.msra.mxu0 0.0
      %1158 = vmatprep.subr.mxu0 0.0
      %1159 = vmatpush1.msra.mxu0 0.0
      %1160 = vmatprep.subr.mxu0 0.0
      %1161 = vmatpush1.msra.mxu0 0.0
      %1162 = vmatprep.subr.mxu0 0.0
      %1163 = vmatpush1.msra.mxu0 0.0
      %1164 = vmatprep.subr.mxu0 0.0
      %1165 = vmatpush1.msra.mxu0 0.0
      %1166 = vmatprep.subr.mxu0 0.0
      %1167 = vmatpush1.msra.mxu0 0.0
      %1168 = vmatprep.subr.mxu0 0.0
      %1169 = vmatpush1.msra.mxu0 0.0
      %1170 = vmatprep.subr.mxu0 0.0
      %1171 = vmatpush1.msra.mxu0 0.0
      %1172 = vmatprep.subr.mxu0 0.0
      %1173 = vmatpush1.msra.mxu0 0.0
      %1174 = vmatprep.subr.mxu0 0.0
      %1175 = vmatpush1.msra.mxu0 0.0
      %1176 = vmatprep.subr.mxu0 0.0
      %1177 = vmatpush1.msra.mxu0 0.0
      %1178 = vmatprep.subr.mxu0 0.0
      %1179 = vmatpush1.msra.mxu0 0.0
      %1180 = vmatprep.subr.mxu0 0.0
      %1181 = vmatpush1.msra.mxu0 0.0
      %1182 = vmatprep.subr.mxu0 0.0
      %1183 = vmatpush1.msra.mxu0 0.0
      %1184 = vmatprep.subr.mxu0 0.0
      %1185 = vmatpush1.msra.mxu0 0.0
      %1186 = vmatprep.subr.mxu0 0.0
      %1187 = vmatpush1.msra.mxu0 0.0
      %1188 = vmatprep.subr.mxu0 0.0
      %1189 = vmatpush1.msra.mxu0 0.0
      %1190 = vmatprep.subr.mxu0 0.0
      %1191 = vmatpush1.msra.mxu0 0.0
      %1192 = vmatprep.mubr.f32.mxu0 0.0
      %1193 = vmatmul.mubr.f32.gmra.mrb[0].mxu0 %v1123
      %v1194 = vpop.f32.mrb[0].mxu0
      %v1195 = vadd.f32 0.0, %v1194
      %v1196 = vpop.f32.mrb[0].mxu0
      %1197 = vmatprep.mubr.f32.mxu0 0.0
      %1198 = vmatmul.mubr.f32.gmra.mrb[0].mxu0 %v1126
      %v1199 = vpop.f32.mrb[0].mxu0
      %v1200 = vadd.f32 0.0, %v1199
      %v1201 = vpop.f32.mrb[0].mxu0
      %1202 = vdwg.mxu0
      %v1203 = vsel %vm483, 1.0, %v1195
      %v1204 = vsel %vm484, 1.0, %v1200
      %v1205 = vld [vmem:[%s452] sm:$0xff]
      %v1206 = vld [vmem:[%s452 + $0x8] sm:$0xff]
      %v1207 = vmul.f32 %v1203, %v1205
      %v1208 = vmul.f32 %v1204, %v1206
      %v1209 = vsel %vm490, %v1207, -inf
      %v1210 = vsel %vm490, %v1208, -inf
      %v1211 = vmax.f32 %v1209, %v1210
      %v1212 = vrot.slane %v1211, 4
      %v1213 = vmax.f32 %v1211, %v1212
      %v1214 = vrot.slane %v1213, 2
      %v1215 = vmax.f32 %v1213, %v1214
      %v1216 = vrot.slane %v1215, 1
      %v1217 = vmax.f32 %v1215, %v1216
      %v1218 = vrcp.pop %v1217
      %v1219 = vmul.f32 %v1207, %v1218
      %v1220 = vmul.f32 %v1208, %v1218
      %v1221 = vlaneseq
      %v1222 = vshrl.u32 %v1221, 7
      %v1223 = vsub.s32 3, %v1222
      %v1224 = vrot.slane %v479, %v1223
      %v1226 = vsel %vm490, %v1219, 0
      %v1229 = vsel %vm490, %v1220, 0
      %1231 = vmatprep.subr.mxu0 0.0
      %1232 = vmatpush1.msra.mxu0 %v1005
      %1233 = vmatprep.subr.mxu0 0.0
      %1234 = vmatpush1.msra.mxu0 %v1010
      %1235 = vmatprep.subr.mxu0 0.0
      %1236 = vmatpush1.msra.mxu0 0.0
      %1237 = vmatprep.subr.mxu0 0.0
      %1238 = vmatpush1.msra.mxu0 0.0
      %1239 = vmatprep.subr.mxu0 0.0
      %1240 = vmatpush1.msra.mxu0 0.0
      %1241 = vmatprep.subr.mxu0 0.0
      %1242 = vmatpush1.msra.mxu0 0.0
      %1243 = vmatprep.subr.mxu0 0.0
      %1244 = vmatpush1.msra.mxu0 0.0
      %1245 = vmatprep.subr.mxu0 0.0
      %1246 = vmatpush1.msra.mxu0 0.0
      %1247 = vmatprep.subr.mxu0 0.0
      %1248 = vmatpush1.msra.mxu0 0.0
      %1249 = vmatprep.subr.mxu0 0.0
      %1250 = vmatpush1.msra.mxu0 0.0
      %1251 = vmatprep.subr.mxu0 0.0
      %1252 = vmatpush1.msra.mxu0 0.0
      %1253 = vmatprep.subr.mxu0 0.0
      %1254 = vmatpush1.msra.mxu0 0.0
      %1255 = vmatprep.subr.mxu0 0.0
      %1256 = vmatpush1.msra.mxu0 0.0
      %1257 = vmatprep.subr.mxu0 0.0
      %1258 = vmatpush1.msra.mxu0 0.0
      %1259 = vmatprep.subr.mxu0 0.0
      %1260 = vmatpush1.msra.mxu0 0.0
      %1261 = vmatprep.subr.mxu0 0.0
      %1262 = vmatpush1.msra.mxu0 0.0
      %1263 = vmatprep.subr.mxu0 0.0
      %1264 = vmatpush1.msra.mxu0 0.0
      %1265 = vmatprep.subr.mxu0 0.0
      %1266 = vmatpush1.msra.mxu0 0.0
      %1267 = vmatprep.subr.mxu0 0.0
      %1268 = vmatpush1.msra.mxu0 0.0
      %1269 = vmatprep.subr.mxu0 0.0
      %1270 = vmatpush1.msra.mxu0 0.0
      %1271 = vmatprep.subr.mxu0 0.0
      %1272 = vmatpush1.msra.mxu0 0.0
      %1273 = vmatprep.subr.mxu0 0.0
      %1274 = vmatpush1.msra.mxu0 0.0
      %1275 = vmatprep.subr.mxu0 0.0
      %1276 = vmatpush1.msra.mxu0 0.0
      %1277 = vmatprep.subr.mxu0 0.0
      %1278 = vmatpush1.msra.mxu0 0.0
      %1279 = vmatprep.subr.mxu0 0.0
      %1280 = vmatpush1.msra.mxu0 0.0
      %1281 = vmatprep.subr.mxu0 0.0
      %1282 = vmatpush1.msra.mxu0 0.0
      %1283 = vmatprep.subr.mxu0 0.0
      %1284 = vmatpush1.msra.mxu0 0.0
      %1285 = vmatprep.subr.mxu0 0.0
      %1286 = vmatpush1.msra.mxu0 0.0
      %1287 = vmatprep.subr.mxu0 0.0
      %1288 = vmatpush1.msra.mxu0 0.0
      %1289 = vmatprep.subr.mxu0 0.0
      %1290 = vmatpush1.msra.mxu0 0.0
      %1291 = vmatprep.subr.mxu0 0.0
      %1292 = vmatpush1.msra.mxu0 0.0
      %1293 = vmatprep.subr.mxu0 0.0
      %1294 = vmatpush1.msra.mxu0 0.0
      %1295 = vmatprep.mubr.f32.mxu0 0.0
      %1296 = vmatmul.mubr.f32.gmra.mrb[0].mxu0 %v1226
      %v1297 = vpop.f32.mrb[0].mxu0
      %v1298 = vadd.f32 %v1224, %v1297
      %v1299 = vpop.f32.mrb[0].mxu0
      %1300 = vmatprep.mubr.f32.mxu0 0.0
      %1301 = vmatmul.mubr.f32.gmra.mrb[0].mxu0 %v1229
      %v1302 = vpop.f32.mrb[0].mxu0
      %v1303 = vadd.f32 %v1224, %v1302
      %v1304 = vpop.f32.mrb[0].mxu0
      %1305 = vdwg.mxu0
      %v1306 = vmax.f32 %v1298, 0.0
      %v1307 = vmax.f32 %v1303, 0.0
      %v1308 = vlaneseq
      %v1309 = vshrl.u32 %v1308, 7
      %v1310 = vsub.s32 4, %v1309
      %v1311 = vrot.slane %v479, %v1310
      %v1312 = vmul.f32 %v1306, %v1311
      %v1313 = vmul.f32 %v1307, %v1311
      %v1314 = vsel %vm583, %v1312, 0.0
      %1315 = vadd.xlane.f32.xlu0 %v1314
      %v1316 = vpop.xlane.xlu0 %1315
      %v1317 = vsel %vm583, %v1313, 0.0
      %1318 = vadd.xlane.f32.xlu0 %v1317
      %v1319 = vpop.xlane.xlu0 %1318
      %v1320 = vmul.f32 %v1316, %v1111
      %v1321 = vmul.f32 %v1319, %v1112
      %v1323 = vsel %vm490, %v1110, 0
      %1325 = vmatprep.subr.mxu0 0.0
      %1326 = vmatpush1.msra.mxu0 %v1320
      %1327 = vmatprep.subr.mxu0 0.0
      %1328 = vmatpush1.msra.mxu0 %v1321
      %1329 = vmatprep.subr.mxu0 0.0
      %1330 = vmatpush1.msra.mxu0 0.0
      %1331 = vmatprep.subr.mxu0 0.0
      %1332 = vmatpush1.msra.mxu0 0.0
      %1333 = vmatprep.subr.mxu0 0.0
      %1334 = vmatpush1.msra.mxu0 0.0
      %1335 = vmatprep.subr.mxu0 0.0
      %1336 = vmatpush1.msra.mxu0 0.0
      %1337 = vmatprep.subr.mxu0 0.0
      %1338 = vmatpush1.msra.mxu0 0.0
      %1339 = vmatprep.subr.mxu0 0.0
      %1340 = vmatpush1.msra.mxu0 0.0
      %1341 = vmatprep.subr.mxu0 0.0
      %1342 = vmatpush1.msra.mxu0 0.0
      %1343 = vmatprep.subr.mxu0 0.0
      %1344 = vmatpush1.msra.mxu0 0.0
      %1345 = vmatprep.subr.mxu0 0.0
      %1346 = vmatpush1.msra.mxu0 0.0
      %1347 = vmatprep.subr.mxu0 0.0
      %1348 = vmatpush1.msra.mxu0 0.0
      %1349 = vmatprep.subr.mxu0 0.0
      %1350 = vmatpush1.msra.mxu0 0.0
      %1351 = vmatprep.subr.mxu0 0.0
      %1352 = vmatpush1.msra.mxu0 0.0
      %1353 = vmatprep.subr.mxu0 0.0
      %1354 = vmatpush1.msra.mxu0 0.0
      %1355 = vmatprep.subr.mxu0 0.0
      %1356 = vmatpush1.msra.mxu0 0.0
      %1357 = vmatprep.subr.mxu0 0.0
      %1358 = vmatpush1.msra.mxu0 0.0
      %1359 = vmatprep.subr.mxu0 0.0
      %1360 = vmatpush1.msra.mxu0 0.0
      %1361 = vmatprep.subr.mxu0 0.0
      %1362 = vmatpush1.msra.mxu0 0.0
      %1363 = vmatprep.subr.mxu0 0.0
      %1364 = vmatpush1.msra.mxu0 0.0
      %1365 = vmatprep.subr.mxu0 0.0
      %1366 = vmatpush1.msra.mxu0 0.0
      %1367 = vmatprep.subr.mxu0 0.0
      %1368 = vmatpush1.msra.mxu0 0.0
      %1369 = vmatprep.subr.mxu0 0.0
      %1370 = vmatpush1.msra.mxu0 0.0
      %1371 = vmatprep.subr.mxu0 0.0
      %1372 = vmatpush1.msra.mxu0 0.0
      %1373 = vmatprep.subr.mxu0 0.0
      %1374 = vmatpush1.msra.mxu0 0.0
      %1375 = vmatprep.subr.mxu0 0.0
      %1376 = vmatpush1.msra.mxu0 0.0
      %1377 = vmatprep.subr.mxu0 0.0
      %1378 = vmatpush1.msra.mxu0 0.0
      %1379 = vmatprep.subr.mxu0 0.0
      %1380 = vmatpush1.msra.mxu0 0.0
      %1381 = vmatprep.subr.mxu0 0.0
      %1382 = vmatpush1.msra.mxu0 0.0
      %1383 = vmatprep.subr.mxu0 0.0
      %1384 = vmatpush1.msra.mxu0 0.0
      %1385 = vmatprep.subr.mxu0 0.0
      %1386 = vmatpush1.msra.mxu0 0.0
      %1387 = vmatprep.subr.mxu0 0.0
      %1388 = vmatpush1.msra.mxu0 0.0
      %1389 = vmatprep.mubr.f32.mxu0 0.0
      %1390 = vmatmul.mubr.f32.gmra.mrb[0].mxu0 %v1323
      %v1391 = vpop.f32.mrb[0].mxu0
      %v1392 = vadd.f32 0.0, %v1391
      %v1393 = vpop.f32.mrb[0].mxu0
      %1394 = vdwg.mxu0
      %v1395 = vsel %vm485, 1.0, %v1392
      %v1396 = vld [vmem:[%s458] sm:$0xff]
      %v1397 = vmul.f32 %v1395, %v1396
      %v1398 = vlaneseq
      %v1399 = vshrl.u32 %v1398, 7
      %v1400 = vsub.s32 5, %v1399
      %v1401 = vrot.slane %v479, %v1400
      %v1403 = vsel %vm583, %v1397, 0
      %1405 = vmatprep.subr.mxu0 0.0
      %1406 = vmatpush1.msra.mxu0 %v1102
      %1407 = vmatprep.subr.mxu0 0.0
      %1408 = vmatpush1.msra.mxu0 0.0
      %1409 = vmatprep.subr.mxu0 0.0
      %1410 = vmatpush1.msra.mxu0 0.0
      %1411 = vmatprep.subr.mxu0 0.0
      %1412 = vmatpush1.msra.mxu0 0.0
      %1413 = vmatprep.subr.mxu0 0.0
      %1414 = vmatpush1.msra.mxu0 0.0
      %1415 = vmatprep.subr.mxu0 0.0
      %1416 = vmatpush1.msra.mxu0 0.0
      %1417 = vmatprep.subr.mxu0 0.0
      %1418 = vmatpush1.msra.mxu0 0.0
      %1419 = vmatprep.subr.mxu0 0.0
      %1420 = vmatpush1.msra.mxu0 0.0
      %1421 = vmatprep.subr.mxu0 0.0
      %1422 = vmatpush1.msra.mxu0 0.0
      %1423 = vmatprep.subr.mxu0 0.0
      %1424 = vmatpush1.msra.mxu0 0.0
      %1425 = vmatprep.subr.mxu0 0.0
      %1426 = vmatpush1.msra.mxu0 0.0
      %1427 = vmatprep.subr.mxu0 0.0
      %1428 = vmatpush1.msra.mxu0 0.0
      %1429 = vmatprep.subr.mxu0 0.0
      %1430 = vmatpush1.msra.mxu0 0.0
      %1431 = vmatprep.subr.mxu0 0.0
      %1432 = vmatpush1.msra.mxu0 0.0
      %1433 = vmatprep.subr.mxu0 0.0
      %1434 = vmatpush1.msra.mxu0 0.0
      %1435 = vmatprep.subr.mxu0 0.0
      %1436 = vmatpush1.msra.mxu0 0.0
      %1437 = vmatprep.subr.mxu0 0.0
      %1438 = vmatpush1.msra.mxu0 0.0
      %1439 = vmatprep.subr.mxu0 0.0
      %1440 = vmatpush1.msra.mxu0 0.0
      %1441 = vmatprep.subr.mxu0 0.0
      %1442 = vmatpush1.msra.mxu0 0.0
      %1443 = vmatprep.subr.mxu0 0.0
      %1444 = vmatpush1.msra.mxu0 0.0
      %1445 = vmatprep.subr.mxu0 0.0
      %1446 = vmatpush1.msra.mxu0 0.0
      %1447 = vmatprep.subr.mxu0 0.0
      %1448 = vmatpush1.msra.mxu0 0.0
      %1449 = vmatprep.subr.mxu0 0.0
      %1450 = vmatpush1.msra.mxu0 0.0
      %1451 = vmatprep.subr.mxu0 0.0
      %1452 = vmatpush1.msra.mxu0 0.0
      %1453 = vmatprep.subr.mxu0 0.0
      %1454 = vmatpush1.msra.mxu0 0.0
      %1455 = vmatprep.subr.mxu0 0.0
      %1456 = vmatpush1.msra.mxu0 0.0
      %1457 = vmatprep.subr.mxu0 0.0
      %1458 = vmatpush1.msra.mxu0 0.0
      %1459 = vmatprep.subr.mxu0 0.0
      %1460 = vmatpush1.msra.mxu0 0.0
      %1461 = vmatprep.subr.mxu0 0.0
      %1462 = vmatpush1.msra.mxu0 0.0
      %1463 = vmatprep.subr.mxu0 0.0
      %1464 = vmatpush1.msra.mxu0 0.0
      %1465 = vmatprep.subr.mxu0 0.0
      %1466 = vmatpush1.msra.mxu0 0.0
      %1467 = vmatprep.subr.mxu0 0.0
      %1468 = vmatpush1.msra.mxu0 0.0
      %1469 = vmatprep.mubr.f32.mxu0 0.0
      %1470 = vmatmul.mubr.f32.gmra.mrb[0].mxu0 %v1403
      %v1471 = vpop.f32.mrb[0].mxu0
      %v1472 = vadd.f32 %v1401, %v1471
      %v1473 = vpop.f32.mrb[0].mxu0
      %1474 = vdwg.mxu0
      %1475 = vst [vmem:[%s477] sm:$0xff] %v1472
      %v1476 = vld [vmem:[%s750] sm:$0xff]
      %v1477 = vld [vmem:[%s752] sm:$0xff]
      %v1478 = vld [vmem:[%s752 + $0x8] sm:$0xff]
      %v1479 = vmul.f32 %v1024, %v1116
      %v1480 = vsel %vm746, %v1479, 0.0
      %1481 = vadd.xlane.f32.xlu0 %v1480
      %v1482 = vpop.xlane.xlu0 %1481
      %v1483 = vmul.f32 %v1482, %v1476
      %v1485 = vsel %vm583, %v1477, 0
      %v1488 = vsel %vm583, %v1478, 0
      %1490 = vmatprep.subr.mxu0 0.0
      %1491 = vmatpush1.msra.mxu0 %v1483
      %1492 = vmatprep.subr.mxu0 0.0
      %1493 = vmatpush1.msra.mxu0 0.0
      %1494 = vmatprep.subr.mxu0 0.0
      %1495 = vmatpush1.msra.mxu0 0.0
      %1496 = vmatprep.subr.mxu0 0.0
      %1497 = vmatpush1.msra.mxu0 0.0
      %1498 = vmatprep.subr.mxu0 0.0
      %1499 = vmatpush1.msra.mxu0 0.0
      %1500 = vmatprep.subr.mxu0 0.0
      %1501 = vmatpush1.msra.mxu0 0.0
      %1502 = vmatprep.subr.mxu0 0.0
      %1503 = vmatpush1.msra.mxu0 0.0
      %1504 = vmatprep.subr.mxu0 0.0
      %1505 = vmatpush1.msra.mxu0 0.0
      %1506 = vmatprep.subr.mxu0 0.0
      %1507 = vmatpush1.msra.mxu0 0.0
      %1508 = vmatprep.subr.mxu0 0.0
      %1509 = vmatpush1.msra.mxu0 0.0
      %1510 = vmatprep.subr.mxu0 0.0
      %1511 = vmatpush1.msra.mxu0 0.0
      %1512 = vmatprep.subr.mxu0 0.0
      %1513 = vmatpush1.msra.mxu0 0.0
      %1514 = vmatprep.subr.mxu0 0.0
      %1515 = vmatpush1.msra.mxu0 0.0
      %1516 = vmatprep.subr.mxu0 0.0
      %1517 = vmatpush1.msra.mxu0 0.0
      %1518 = vmatprep.subr.mxu0 0.0
      %1519 = vmatpush1.msra.mxu0 0.0
      %1520 = vmatprep.subr.mxu0 0.0
      %1521 = vmatpush1.msra.mxu0 0.0
      %1522 = vmatprep.subr.mxu0 0.0
      %1523 = vmatpush1.msra.mxu0 0.0
      %1524 = vmatprep.subr.mxu0 0.0
      %1525 = vmatpush1.msra.mxu0 0.0
      %1526 = vmatprep.subr.mxu0 0.0
      %1527 = vmatpush1.msra.mxu0 0.0
      %1528 = vmatprep.subr.mxu0 0.0
      %1529 = vmatpush1.msra.mxu0 0.0
      %1530 = vmatprep.subr.mxu0 0.0
      %1531 = vmatpush1.msra.mxu0 0.0
      %1532 = vmatprep.subr.mxu0 0.0
      %1533 = vmatpush1.msra.mxu0 0.0
      %1534 = vmatprep.subr.mxu0 0.0
      %1535 = vmatpush1.msra.mxu0 0.0
      %1536 = vmatprep.subr.mxu0 0.0
      %1537 = vmatpush1.msra.mxu0 0.0
      %1538 = vmatprep.subr.mxu0 0.0
      %1539 = vmatpush1.msra.mxu0 0.0
      %1540 = vmatprep.subr.mxu0 0.0
      %1541 = vmatpush1.msra.mxu0 0.0
      %1542 = vmatprep.subr.mxu0 0.0
      %1543 = vmatpush1.msra.mxu0 0.0
      %1544 = vmatprep.subr.mxu0 0.0
      %1545 = vmatpush1.msra.mxu0 0.0
      %1546 = vmatprep.subr.mxu0 0.0
      %1547 = vmatpush1.msra.mxu0 0.0
      %1548 = vmatprep.subr.mxu0 0.0
      %1549 = vmatpush1.msra.mxu0 0.0
      %1550 = vmatprep.subr.mxu0 0.0
      %1551 = vmatpush1.msra.mxu0 0.0
      %1552 = vmatprep.subr.mxu0 0.0
      %1553 = vmatpush1.msra.mxu0 0.0
      %1554 = vmatprep.mubr.f32.mxu0 0.0
      %1555 = vmatmul.mubr.f32.gmra.mrb[0].mxu0 %v1485
      %v1556 = vpop.f32.mrb[0].mxu0
      %v1557 = vadd.f32 0.0, %v1556
      %v1558 = vpop.f32.mrb[0].mxu0
      %1559 = vmatprep.mubr.f32.mxu0 0.0
      %1560 = vmatmul.mubr.f32.gmra.mrb[0].mxu0 %v1488
      %v1561 = vpop.f32.mrb[0].mxu0
      %v1562 = vadd.f32 0.0, %v1561
      %v1563 = vpop.f32.mrb[0].mxu0
      %1564 = vdwg.mxu0
      %v1565 = vsel %vm483, 1.0, %v1557
      %v1566 = vsel %vm484, 1.0, %v1562
      %s1567 = scalar_lea.vmem %s452, 16
      %v1568 = vld [vmem:[%s1567] sm:$0xff]
      %v1569 = vld [vmem:[%s1567 + $0x8] sm:$0xff]
      %v1570 = vmul.f32 %v1565, %v1568
      %v1571 = vmul.f32 %v1566, %v1569
      %v1572 = vsel %vm490, %v1570, -inf
      %v1573 = vsel %vm490, %v1571, -inf
      %v1574 = vmax.f32 %v1572, %v1573
      %v1575 = vrot.slane %v1574, 4
      %v1576 = vmax.f32 %v1574, %v1575
      %v1577 = vrot.slane %v1576, 2
      %v1578 = vmax.f32 %v1576, %v1577
      %v1579 = vrot.slane %v1578, 1
      %v1580 = vmax.f32 %v1578, %v1579
      %v1581 = vrcp.pop %v1580
      %v1582 = vmul.f32 %v1570, %v1581
      %v1583 = vmul.f32 %v1571, %v1581
      %v1585 = vsel %vm490, %v1582, 0
      %v1588 = vsel %vm490, %v1583, 0
      %1590 = vmatprep.subr.mxu0 0.0
      %1591 = vmatpush1.msra.mxu0 %v1015
      %1592 = vmatprep.subr.mxu0 0.0
      %1593 = vmatpush1.msra.mxu0 %v1020
      %1594 = vmatprep.subr.mxu0 0.0
      %1595 = vmatpush1.msra.mxu0 0.0
      %1596 = vmatprep.subr.mxu0 0.0
      %1597 = vmatpush1.msra.mxu0 0.0
      %1598 = vmatprep.subr.mxu0 0.0
      %1599 = vmatpush1.msra.mxu0 0.0
      %1600 = vmatprep.subr.mxu0 0.0
      %1601 = vmatpush1.msra.mxu0 0.0
      %1602 = vmatprep.subr.mxu0 0.0
      %1603 = vmatpush1.msra.mxu0 0.0
      %1604 = vmatprep.subr.mxu0 0.0
      %1605 = vmatpush1.msra.mxu0 0.0
      %1606 = vmatprep.subr.mxu0 0.0
      %1607 = vmatpush1.msra.mxu0 0.0
      %1608 = vmatprep.subr.mxu0 0.0
      %1609 = vmatpush1.msra.mxu0 0.0
      %1610 = vmatprep.subr.mxu0 0.0
      %1611 = vmatpush1.msra.mxu0 0.0
      %1612 = vmatprep.subr.mxu0 0.0
      %1613 = vmatpush1.msra.mxu0 0.0
      %1614 = vmatprep.subr.mxu0 0.0
      %1615 = vmatpush1.msra.mxu0 0.0
      %1616 = vmatprep.subr.mxu0 0.0
      %1617 = vmatpush1.msra.mxu0 0.0
      %1618 = vmatprep.subr.mxu0 0.0
      %1619 = vmatpush1.msra.mxu0 0.0
      %1620 = vmatprep.subr.mxu0 0.0
      %1621 = vmatpush1.msra.mxu0 0.0
      %1622 = vmatprep.subr.mxu0 0.0
      %1623 = vmatpush1.msra.mxu0 0.0
      %1624 = vmatprep.subr.mxu0 0.0
      %1625 = vmatpush1.msra.mxu0 0.0
      %1626 = vmatprep.subr.mxu0 0.0
      %1627 = vmatpush1.msra.mxu0 0.0
      %1628 = vmatprep.subr.mxu0 0.0
      %1629 = vmatpush1.msra.mxu0 0.0
      %1630 = vmatprep.subr.mxu0 0.0
      %1631 = vmatpush1.msra.mxu0 0.0
      %1632 = vmatprep.subr.mxu0 0.0
      %1633 = vmatpush1.msra.mxu0 0.0
      %1634 = vmatprep.subr.mxu0 0.0
      %1635 = vmatpush1.msra.mxu0 0.0
      %1636 = vmatprep.subr.mxu0 0.0
      %1637 = vmatpush1.msra.mxu0 0.0
      %1638 = vmatprep.subr.mxu0 0.0
      %1639 = vmatpush1.msra.mxu0 0.0
      %1640 = vmatprep.subr.mxu0 0.0
      %1641 = vmatpush1.msra.mxu0 0.0
      %1642 = vmatprep.subr.mxu0 0.0
      %1643 = vmatpush1.msra.mxu0 0.0
      %1644 = vmatprep.subr.mxu0 0.0
      %1645 = vmatpush1.msra.mxu0 0.0
      %1646 = vmatprep.subr.mxu0 0.0
      %1647 = vmatpush1.msra.mxu0 0.0
      %1648 = vmatprep.subr.mxu0 0.0
      %1649 = vmatpush1.msra.mxu0 0.0
      %1650 = vmatprep.subr.mxu0 0.0
      %1651 = vmatpush1.msra.mxu0 0.0
      %1652 = vmatprep.subr.mxu0 0.0
      %1653 = vmatpush1.msra.mxu0 0.0
      %1654 = vmatprep.mubr.f32.mxu0 0.0
      %1655 = vmatmul.mubr.f32.gmra.mrb[0].mxu0 %v1585
      %v1656 = vpop.f32.mrb[0].mxu0
      %v1657 = vadd.f32 %v1224, %v1656
      %v1658 = vpop.f32.mrb[0].mxu0
      %1659 = vmatprep.mubr.f32.mxu0 0.0
      %1660 = vmatmul.mubr.f32.gmra.mrb[0].mxu0 %v1588
      %v1661 = vpop.f32.mrb[0].mxu0
      %v1662 = vadd.f32 %v1224, %v1661
      %v1663 = vpop.f32.mrb[0].mxu0
      %1664 = vdwg.mxu0
      %v1665 = vmax.f32 %v1657, 0.0
      %v1666 = vmax.f32 %v1662, 0.0
      %v1667 = vmul.f32 %v1665, %v1311
      %v1668 = vmul.f32 %v1666, %v1311
      %v1669 = vsel %vm583, %v1667, 0.0
      %1670 = vadd.xlane.f32.xlu0 %v1669
      %v1671 = vpop.xlane.xlu0 %1670
      %v1672 = vsel %vm583, %v1668, 0.0
      %1673 = vadd.xlane.f32.xlu0 %v1672
      %v1674 = vpop.xlane.xlu0 %1673
      %v1675 = vmul.f32 %v1671, %v1477
      %v1676 = vmul.f32 %v1674, %v1478
      %v1678 = vsel %vm490, %v1476, 0
      %1680 = vmatprep.subr.mxu0 0.0
      %1681 = vmatpush1.msra.mxu0 %v1675
      %1682 = vmatprep.subr.mxu0 0.0
      %1683 = vmatpush1.msra.mxu0 %v1676
      %1684 = vmatprep.subr.mxu0 0.0
      %1685 = vmatpush1.msra.mxu0 0.0
      %1686 = vmatprep.subr.mxu0 0.0
      %1687 = vmatpush1.msra.mxu0 0.0
      %1688 = vmatprep.subr.mxu0 0.0
      %1689 = vmatpush1.msra.mxu0 0.0
      %1690 = vmatprep.subr.mxu0 0.0
      %1691 = vmatpush1.msra.mxu0 0.0
      %1692 = vmatprep.subr.mxu0 0.0
      %1693 = vmatpush1.msra.mxu0 0.0
      %1694 = vmatprep.subr.mxu0 0.0
      %1695 = vmatpush1.msra.mxu0 0.0
      %1696 = vmatprep.subr.mxu0 0.0
      %1697 = vmatpush1.msra.mxu0 0.0
      %1698 = vmatprep.subr.mxu0 0.0
      %1699 = vmatpush1.msra.mxu0 0.0
      %1700 = vmatprep.subr.mxu0 0.0
      %1701 = vmatpush1.msra.mxu0 0.0
      %1702 = vmatprep.subr.mxu0 0.0
      %1703 = vmatpush1.msra.mxu0 0.0
      %1704 = vmatprep.subr.mxu0 0.0
      %1705 = vmatpush1.msra.mxu0 0.0
      %1706 = vmatprep.subr.mxu0 0.0
      %1707 = vmatpush1.msra.mxu0 0.0
      %1708 = vmatprep.subr.mxu0 0.0
      %1709 = vmatpush1.msra.mxu0 0.0
      %1710 = vmatprep.subr.mxu0 0.0
      %1711 = vmatpush1.msra.mxu0 0.0
      %1712 = vmatprep.subr.mxu0 0.0
      %1713 = vmatpush1.msra.mxu0 0.0
      %1714 = vmatprep.subr.mxu0 0.0
      %1715 = vmatpush1.msra.mxu0 0.0
      %1716 = vmatprep.subr.mxu0 0.0
      %1717 = vmatpush1.msra.mxu0 0.0
      %1718 = vmatprep.subr.mxu0 0.0
      %1719 = vmatpush1.msra.mxu0 0.0
      %1720 = vmatprep.subr.mxu0 0.0
      %1721 = vmatpush1.msra.mxu0 0.0
      %1722 = vmatprep.subr.mxu0 0.0
      %1723 = vmatpush1.msra.mxu0 0.0
      %1724 = vmatprep.subr.mxu0 0.0
      %1725 = vmatpush1.msra.mxu0 0.0
      %1726 = vmatprep.subr.mxu0 0.0
      %1727 = vmatpush1.msra.mxu0 0.0
      %1728 = vmatprep.subr.mxu0 0.0
      %1729 = vmatpush1.msra.mxu0 0.0
      %1730 = vmatprep.subr.mxu0 0.0
      %1731 = vmatpush1.msra.mxu0 0.0
      %1732 = vmatprep.subr.mxu0 0.0
      %1733 = vmatpush1.msra.mxu0 0.0
      %1734 = vmatprep.subr.mxu0 0.0
      %1735 = vmatpush1.msra.mxu0 0.0
      %1736 = vmatprep.subr.mxu0 0.0
      %1737 = vmatpush1.msra.mxu0 0.0
      %1738 = vmatprep.subr.mxu0 0.0
      %1739 = vmatpush1.msra.mxu0 0.0
      %1740 = vmatprep.subr.mxu0 0.0
      %1741 = vmatpush1.msra.mxu0 0.0
      %1742 = vmatprep.subr.mxu0 0.0
      %1743 = vmatpush1.msra.mxu0 0.0
      %1744 = vmatprep.mubr.f32.mxu0 0.0
      %1745 = vmatmul.mubr.f32.gmra.mrb[0].mxu0 %v1678
      %v1746 = vpop.f32.mrb[0].mxu0
      %v1747 = vadd.f32 0.0, %v1746
      %v1748 = vpop.f32.mrb[0].mxu0
      %1749 = vdwg.mxu0
      %v1750 = vsel %vm485, 1.0, %v1747
      %v1751 = vld [vmem:[%s839] sm:$0xff]
      %v1752 = vmul.f32 %v1750, %v1751
      %v1754 = vsel %vm583, %v1752, 0
      %1756 = vmatprep.subr.mxu0 0.0
      %1757 = vmatpush1.msra.mxu0 %v1107
      %1758 = vmatprep.subr.mxu0 0.0
      %1759 = vmatpush1.msra.mxu0 0.0
      %1760 = vmatprep.subr.mxu0 0.0
      %1761 = vmatpush1.msra.mxu0 0.0
      %1762 = vmatprep.subr.mxu0 0.0
      %1763 = vmatpush1.msra.mxu0 0.0
      %1764 = vmatprep.subr.mxu0 0.0
      %1765 = vmatpush1.msra.mxu0 0.0
      %1766 = vmatprep.subr.mxu0 0.0
      %1767 = vmatpush1.msra.mxu0 0.0
      %1768 = vmatprep.subr.mxu0 0.0
      %1769 = vmatpush1.msra.mxu0 0.0
      %1770 = vmatprep.subr.mxu0 0.0
      %1771 = vmatpush1.msra.mxu0 0.0
      %1772 = vmatprep.subr.mxu0 0.0
      %1773 = vmatpush1.msra.mxu0 0.0
      %1774 = vmatprep.subr.mxu0 0.0
      %1775 = vmatpush1.msra.mxu0 0.0
      %1776 = vmatprep.subr.mxu0 0.0
      %1777 = vmatpush1.msra.mxu0 0.0
      %1778 = vmatprep.subr.mxu0 0.0
      %1779 = vmatpush1.msra.mxu0 0.0
      %1780 = vmatprep.subr.mxu0 0.0
      %1781 = vmatpush1.msra.mxu0 0.0
      %1782 = vmatprep.subr.mxu0 0.0
      %1783 = vmatpush1.msra.mxu0 0.0
      %1784 = vmatprep.subr.mxu0 0.0
      %1785 = vmatpush1.msra.mxu0 0.0
      %1786 = vmatprep.subr.mxu0 0.0
      %1787 = vmatpush1.msra.mxu0 0.0
      %1788 = vmatprep.subr.mxu0 0.0
      %1789 = vmatpush1.msra.mxu0 0.0
      %1790 = vmatprep.subr.mxu0 0.0
      %1791 = vmatpush1.msra.mxu0 0.0
      %1792 = vmatprep.subr.mxu0 0.0
      %1793 = vmatpush1.msra.mxu0 0.0
      %1794 = vmatprep.subr.mxu0 0.0
      %1795 = vmatpush1.msra.mxu0 0.0
      %1796 = vmatprep.subr.mxu0 0.0
      %1797 = vmatpush1.msra.mxu0 0.0
      %1798 = vmatprep.subr.mxu0 0.0
      %1799 = vmatpush1.msra.mxu0 0.0
      %1800 = vmatprep.subr.mxu0 0.0
      %1801 = vmatpush1.msra.mxu0 0.0
      %1802 = vmatprep.subr.mxu0 0.0
      %1803 = vmatpush1.msra.mxu0 0.0
      %1804 = vmatprep.subr.mxu0 0.0
      %1805 = vmatpush1.msra.mxu0 0.0
      %1806 = vmatprep.subr.mxu0 0.0
      %1807 = vmatpush1.msra.mxu0 0.0
      %1808 = vmatprep.subr.mxu0 0.0
      %1809 = vmatpush1.msra.mxu0 0.0
      %1810 = vmatprep.subr.mxu0 0.0
      %1811 = vmatpush1.msra.mxu0 0.0
      %1812 = vmatprep.subr.mxu0 0.0
      %1813 = vmatpush1.msra.mxu0 0.0
      %1814 = vmatprep.subr.mxu0 0.0
      %1815 = vmatpush1.msra.mxu0 0.0
      %1816 = vmatprep.subr.mxu0 0.0
      %1817 = vmatpush1.msra.mxu0 0.0
      %1818 = vmatprep.subr.mxu0 0.0
      %1819 = vmatpush1.msra.mxu0 0.0
      %1820 = vmatprep.mubr.f32.mxu0 0.0
      %1821 = vmatmul.mubr.f32.gmra.mrb[0].mxu0 %v1754
      %v1822 = vpop.f32.mrb[0].mxu0
      %v1823 = vadd.f32 %v1401, %v1822
      %v1824 = vpop.f32.mrb[0].mxu0
      %1825 = vdwg.mxu0
      %1826 = vst [vmem:[%s477 + $0x8] sm:$0xff] %v1823
      %s1827 = smul.u32 2, %s21
      %p1828 = scmp.lt.s32.totalorder %s1827, 3
      %s1829 = scalar_select %p1828, %s1827, 3
      %s1830 = smul.addr %s1829, 8
      %s1831 = scalar_lea.vmem %s10, %s1830
      // Predicated region
      $region61: #{_gcn_batched.1} parent=59 // pred_check
        %p1832 = pneg %p279
      $region62: #{_gcn_batched.1} parent=59 // pred_check_branch
        %1834 = sbr.rel (%p1832) target = $region64
      $region63: #{_gcn_batched.1} parent=59 // pred_region
        %s1835 = smul.u32 2, %s21
      $region64: #{_gcn_batched.1} parent=59 // pred_fallthru
        _
    $region60: #{_gcn_batched.1} parent=5 // pred_fallthru
      _
    %p1836 = scmp.le.s32.totalorder 2, %s16
    // Predicated region
    $region65: #{_gcn_batched.1} parent=5 // pred_check
      %p1837 = pneg %p1836
    $region66: #{_gcn_batched.1} parent=5 // pred_check_branch
      %1839 = sbr.rel (%p1837) target = $region68
    $region67: #{_gcn_batched.1} parent=5 // pred_region
      %s1840 = ssub.s32 %s16, 2
      // Predicated region
      $region69: #{_gcn_batched.1} parent=67 // pred_check
        %p1841 = pneg %p285
      $region70: #{_gcn_batched.1} parent=67 // pred_check_branch
        %1843 = sbr.rel (%p1841) target = $region72
      $region71: #{_gcn_batched.1} parent=67 // pred_region
        %s1844 = smul.u32 2, %s22
        %p1845 = scmp.lt.s32.totalorder %s1844, 3
        %s1846 = scalar_select %p1845, %s1844, 3
        %s1847 = smul.addr %s1846, 8
        %s1848 = scalar_lea.vmem %s10, %s1847
      $region72: #{_gcn_batched.1} parent=67 // pred_fallthru
        _
    $region68: #{_gcn_batched.1} parent=5 // pred_fallthru
      _
  $region6: #{_gcn_batched.1} parent=0 // loop_footer
    %s20 = sadd.s32 1, %s16
  $region7: #{_gcn_batched.1} parent=0 // loop_footer_branch
    %15 = sbr.rel target = $region3
  $region8: #{_gcn_batched.1} parent=0 // loop_exit
    _

</llo_original>
